<compile_context>
chip_gen: v6e
topology: v6e:2x2x1
jax: 0.10.0
libtpu: 0.0.40
codegen_flags: <defaults>
</compile_context>

<pallas_src>
import functools

import jax
import jax.numpy as jnp
from jax.experimental import pallas as pl
from jax.experimental.pallas import tpu as pltpu


def _attention_kernel(xq_ref, xkv_ref, wq_ref, wk_ref, wv_ref, wout3_ref,
                      bout_ref, o_ref, q_sc, k_sc, v_sc,
                      *, heads, dim_head, scale):
    """One (batch, q-tile) step of multi-head self-attention.

    xq_ref  : (1, TQ, D)        q-tile slab of x
    xkv_ref : (1, N,  D)        full-sequence slab of x (K/V source), stays
                                resident for a whole batch (block index fixed)
    wq/wk/wv: (D, inner)        projection weights, inner = heads * dim_head
    wout3   : (H, dh, D)        output projection weight, split per head
    bout    : (1, D)
    o_ref   : (1, TQ, D)
    q_sc    : (H, TQ, dh) VMEM  head-major scratch for q
    k_sc/v_sc: (H, N, dh) VMEM  head-major scratch for k / v
    """
    xq = xq_ref[0]                                    # (TQ, D)
    xkv = xkv_ref[0]                                  # (N, D)

    # --- Full-width QKV projections (lane-dense MXU matmuls, contraction = D).
    q2 = jnp.dot(xq, wq_ref[...], preferred_element_type=jnp.float32)    # (TQ, inner)
    k2 = jnp.dot(xkv, wk_ref[...], preferred_element_type=jnp.float32)   # (N, inner)
    v2 = jnp.dot(xkv, wv_ref[...], preferred_element_type=jnp.float32)   # (N, inner)
    q2 = q2 * scale          # scale q (TQ*inner mults) instead of the (H,TQ,N) scores

    # --- Head split: one pass of static slices into head-major VMEM scratch.
    for h in range(heads):
        lo = h * dim_head
        hi = lo + dim_head
        q_sc[h] = q2[:, lo:hi].astype(q_sc.dtype)
        k_sc[h] = k2[:, lo:hi].astype(k_sc.dtype)
        v_sc[h] = v2[:, lo:hi].astype(v_sc.dtype)

    q3 = q_sc[...]                                    # (H, TQ, dh)
    k3 = k_sc[...]                                    # (H, N,  dh)
    v3 = v_sc[...]                                    # (H, N,  dh)

    # --- Batched attention scores: contract last dims, batch over heads (no kh.T).
    dots = jnp.einsum('hqd,hkd->hqk', q3, k3,
                      preferred_element_type=jnp.float32)                # (H, TQ, N)

    # --- Numerically-stable softmax in f32; reciprocal on the (otherwise idle) EUP.
    m = jnp.max(dots, axis=-1, keepdims=True)
    e = jnp.exp(dots - m)
    attn = e * pl.reciprocal(jnp.sum(e, axis=-1, keepdims=True), approx=True)

    # --- Weighted values, batched over heads.
    out = jnp.einsum('hqk,hkd->hqd', attn.astype(v3.dtype), v3,
                     preferred_element_type=jnp.float32)                 # (H, TQ, dh)

    # --- Output projection without re-merging heads in-kernel:
    #     out_merged @ W_out == sum_h out_h @ W_out[h*dh:(h+1)*dh, :]
    pou = jnp.einsum('hqd,hde->hqe', out.astype(wout3_ref.dtype), wout3_ref[...],
                     preferred_element_type=jnp.float32)                 # (H, TQ, D)
    proj = jnp.sum(pou, axis=0) + bout_ref[...].astype(jnp.float32)      # (TQ, D)

    # Dropout in to_out is identity at inference time.
    o_ref[0] = proj.astype(o_ref.dtype)


def attention_pallas(x, w_qkv, w_out, b_out, *, heads, dim_head, q_tile=None):
    """x: (B, N, D); w_qkv: (D, 3*H*dh); w_out: (H*dh, D); b_out: (1, D)."""
    B, N, D = x.shape
    inner = heads * dim_head
    assert w_qkv.shape == (D, 3 * inner)
    assert w_out.shape == (inner, D)
    assert b_out.shape == (1, D)
    scale = dim_head ** -0.5

    # Split the fused QKV weight (and reshape W_out per head) on the host side so
    # the kernel never has to lane-slice the projection weights.
    w_q = w_qkv[:, 0 * inner:1 * inner]
    w_k = w_qkv[:, 1 * inner:2 * inner]
    w_v = w_qkv[:, 2 * inner:3 * inner]
    w_out3 = w_out.reshape(heads, dim_head, D)

    # q-tile size: keep the whole sequence when it is modest (ViT: N = 197),
    # otherwise tile so the (H, TQ, N) scores stay bounded in VMEM and the
    # pipeline has enough steps to overlap DMA.
    if q_tile is not None:
        tq = q_tile
    elif N <= 512 or N % 128 != 0:
        tq = N
    else:
        tq = 128
    assert N % tq == 0, "sequence length must be divisible by the q tile"
    n_q_tiles = N // tq
    # TODO(synk): for very long sequences, switch to flash-style KV tiling with an
    # online softmax instead of keeping the full (H, TQ, N) scores resident.

    kernel = functools.partial(_attention_kernel,
                               heads=heads, dim_head=dim_head, scale=scale)

    return pl.pallas_call(
        kernel,
        out_shape=jax.ShapeDtypeStruct((B, N, D), x.dtype),
        grid_spec=pltpu.PrefetchScalarGridSpec(
            num_scalar_prefetch=0,
            grid=(B, n_q_tiles),
            in_specs=[
                pl.BlockSpec((1, tq, D), lambda b, qi: (b, qi, 0)),    # x: q tile
                pl.BlockSpec((1, N, D), lambda b, qi: (b, 0, 0)),      # x: full seq (K/V)
                pl.BlockSpec((D, inner), lambda b, qi: (0, 0)),        # W_q
                pl.BlockSpec((D, inner), lambda b, qi: (0, 0)),        # W_k
                pl.BlockSpec((D, inner), lambda b, qi: (0, 0)),        # W_v
                pl.BlockSpec((heads, dim_head, D), lambda b, qi: (0, 0, 0)),  # W_out/head
                pl.BlockSpec((1, D), lambda b, qi: (0, 0)),            # b_out
            ],
            out_specs=pl.BlockSpec((1, tq, D), lambda b, qi: (b, qi, 0)),
            scratch_shapes=[
                pltpu.VMEM((heads, tq, dim_head), x.dtype),   # q, head-major
                pltpu.VMEM((heads, N, dim_head), x.dtype),    # k, head-major
                pltpu.VMEM((heads, N, dim_head), x.dtype),    # v, head-major
            ],
        ),
        compiler_params=pltpu.CompilerParams(
            dimension_semantics=("parallel", "parallel"),
            vmem_limit_bytes=64 * 1024 * 1024,
        ),
    )(x, x, w_q, w_k, w_v, w_out3, b_out)


def attention_reference(x, w_qkv, w_out, b_out, *, heads, dim_head):
    """Plain-JAX reference mirroring the PyTorch module."""
    B, N, D = x.shape
    inner = heads * dim_head
    scale = dim_head ** -0.5
    qkv = x @ w_qkv                                           # (B, N, 3*inner)
    q, k, v = jnp.split(qkv, 3, axis=-1)

    def to_heads(t):
        return jnp.transpose(t.reshape(B, N, heads, dim_head), (0, 2, 1, 3))

    q, k, v = map(to_heads, (q, k, v))                        # (B, H, N, dh)
    dots = jnp.einsum('bhnd,bhmd->bhnm', q, k) * scale
    attn = jax.nn.softmax(dots, axis=-1)
    out = jnp.einsum('bhnm,bhmd->bhnd', attn, v)
    out = jnp.transpose(out, (0, 2, 1, 3)).reshape(B, N, inner)
    return out @ w_out + b_out[0]


if __name__ == "__main__":
    # Small, deterministic test shapes consistent with the module.
    B, N, D = 2, 8, 32          # batch, tokens, model dim
    HEADS, DIM_HEAD = 4, 8      # inner_dim = 32
    INNER = HEADS * DIM_HEAD

    key = jax.random.PRNGKey(0)
    kx, kq, kw, kb = jax.random.split(key, 4)

    x = jax.random.normal(kx, (B, N, D), dtype=jnp.float32)
    w_qkv = jax.random.normal(kq, (D, 3 * INNER), dtype=jnp.float32) * 0.05
    w_out = jax.random.normal(kw, (INNER, D), dtype=jnp.float32) * 0.05
    b_out = jax.random.normal(kb, (1, D), dtype=jnp.float32) * 0.05

    y = attention_pallas(x, w_qkv, w_out, b_out, heads=HEADS, dim_head=DIM_HEAD)
    y = jax.block_until_ready(y)

    y_ref = attention_reference(x, w_qkv, w_out, b_out, heads=HEADS, dim_head=DIM_HEAD)
    # approx=True softmax reciprocal -> slightly looser tolerance than exact f32.
    assert jnp.allclose(y, y_ref, atol=2e-3, rtol=2e-2), "mismatch vs reference"

    print("KERNEL_OK")
</pallas_src>

<mosaic_0001>
module attributes {stable_mosaic.version = 11 : i64} {
  func.func @_attention_kernel(%arg0: i32, %arg1: i32, %arg2: memref<1x8x32xf32, #tpu.memory_space<vmem>>, %arg3: memref<1x8x32xf32, #tpu.memory_space<vmem>>, %arg4: memref<32x32xf32, #tpu.memory_space<vmem>>, %arg5: memref<32x32xf32, #tpu.memory_space<vmem>>, %arg6: memref<32x32xf32, #tpu.memory_space<vmem>>, %arg7: memref<4x8x32xf32, #tpu.memory_space<vmem>>, %arg8: memref<1x32xf32, #tpu.memory_space<vmem>>, %arg9: memref<1x8x32xf32, #tpu.memory_space<vmem>>, %arg10: memref<4x8x8xf32, #tpu.memory_space<vmem>>, %arg11: memref<4x8x8xf32, #tpu.memory_space<vmem>>, %arg12: memref<4x8x8xf32, #tpu.memory_space<vmem>>) attributes {dimension_semantics = [#tpu.dimension_semantics<parallel>, #tpu.dimension_semantics<parallel>], iteration_bounds = array<i64: 2, 1>, scalar_prefetch = 0 : i64, scratch_operands = 3 : i64, tpu.core_type = #tpu.core_type<tc>, window_params = [{transform_indices = @transform_0, window_bounds = array<i64: 1, 8, 32>}, {transform_indices = @transform_1, window_bounds = array<i64: 1, 8, 32>}, {pipeline_mode = #tpu.pipeline_mode<synchronous>, transform_indices = @transform_2, window_bounds = array<i64: 32, 32>}, {pipeline_mode = #tpu.pipeline_mode<synchronous>, transform_indices = @transform_3, window_bounds = array<i64: 32, 32>}, {pipeline_mode = #tpu.pipeline_mode<synchronous>, transform_indices = @transform_4, window_bounds = array<i64: 32, 32>}, {pipeline_mode = #tpu.pipeline_mode<synchronous>, transform_indices = @transform_5, window_bounds = array<i64: 4, 8, 32>}, {pipeline_mode = #tpu.pipeline_mode<synchronous>, transform_indices = @transform_6, window_bounds = array<i64: 1, 32>}, {transform_indices = @transform_7, window_bounds = array<i64: 1, 8, 32>}]} {
    %c0 = arith.constant 0 : index
    %c0_0 = arith.constant 0 : index
    %c0_1 = arith.constant 0 : index
    %0 = vector.load %arg2[%c0, %c0_0, %c0_1] : memref<1x8x32xf32, #tpu.memory_space<vmem>>, vector<1x8x32xf32>
    %1 = vector.shape_cast %0 : vector<1x8x32xf32> to vector<8x32xf32>
    %c0_2 = arith.constant 0 : index
    %c0_3 = arith.constant 0 : index
    %c0_4 = arith.constant 0 : index
    %2 = vector.load %arg3[%c0_2, %c0_3, %c0_4] : memref<1x8x32xf32, #tpu.memory_space<vmem>>, vector<1x8x32xf32>
    %3 = vector.shape_cast %2 : vector<1x8x32xf32> to vector<8x32xf32>
    %c0_5 = arith.constant 0 : index
    %c0_6 = arith.constant 0 : index
    %4 = vector.load %arg4[%c0_5, %c0_6] : memref<32x32xf32, #tpu.memory_space<vmem>>, vector<32x32xf32>
    %cst = arith.constant dense<0.000000e+00> : vector<8x32xf32>
    %5 = tpu.matmul %1, %4, %cst {dimension_numbers = #tpu.dot_dimension_numbers<[1], [0], [0], [1], [0, 0, 1, 1], [], []>} : vector<8x32xf32>, vector<32x32xf32>, vector<8x32xf32> -> vector<8x32xf32>
    %c0_7 = arith.constant 0 : index
    %c0_8 = arith.constant 0 : index
    %6 = vector.load %arg5[%c0_7, %c0_8] : memref<32x32xf32, #tpu.memory_space<vmem>>, vector<32x32xf32>
    %cst_9 = arith.constant dense<0.000000e+00> : vector<8x32xf32>
    %7 = tpu.matmul %3, %6, %cst_9 {dimension_numbers = #tpu.dot_dimension_numbers<[1], [0], [0], [1], [0, 0, 1, 1], [], []>} : vector<8x32xf32>, vector<32x32xf32>, vector<8x32xf32> -> vector<8x32xf32>
    %c0_10 = arith.constant 0 : index
    %c0_11 = arith.constant 0 : index
    %8 = vector.load %arg6[%c0_10, %c0_11] : memref<32x32xf32, #tpu.memory_space<vmem>>, vector<32x32xf32>
    %cst_12 = arith.constant dense<0.000000e+00> : vector<8x32xf32>
    %9 = tpu.matmul %3, %8, %cst_12 {dimension_numbers = #tpu.dot_dimension_numbers<[1], [0], [0], [1], [0, 0, 1, 1], [], []>} : vector<8x32xf32>, vector<32x32xf32>, vector<8x32xf32> -> vector<8x32xf32>
    %cst_13 = arith.constant 0.353553385 : f32
    %10 = vector.broadcast %cst_13 : f32 to vector<8x32xf32>
    %11 = arith.mulf %5, %10 : vector<8x32xf32>
    %12 = vector.extract_strided_slice %11 {offsets = [0, 0], sizes = [8, 8], strides = [1, 1]} : vector<8x32xf32> to vector<8x8xf32>
    %c0_14 = arith.constant 0 : index
    %c0_15 = arith.constant 0 : index
    %c0_16 = arith.constant 0 : index
    %13 = vector.load %arg10[%c0_14, %c0_15, %c0_16] : memref<4x8x8xf32, #tpu.memory_space<vmem>>, vector<1x8x8xf32>
    %14 = vector.shape_cast %13 : vector<1x8x8xf32> to vector<8x8xf32>
    %15 = vector.shape_cast %12 : vector<8x8xf32> to vector<1x8x8xf32>
    tpu.vector_store %arg10[%c0_14, %c0_15, %c0_16], %15 {strides = array<i32>} : memref<4x8x8xf32, #tpu.memory_space<vmem>>, vector<1x8x8xf32>,
    %16 = vector.extract_strided_slice %7 {offsets = [0, 0], sizes = [8, 8], strides = [1, 1]} : vector<8x32xf32> to vector<8x8xf32>
    %c0_17 = arith.constant 0 : index
    %c0_18 = arith.constant 0 : index
    %c0_19 = arith.constant 0 : index
    %17 = vector.load %arg11[%c0_17, %c0_18, %c0_19] : memref<4x8x8xf32, #tpu.memory_space<vmem>>, vector<1x8x8xf32>
    %18 = vector.shape_cast %17 : vector<1x8x8xf32> to vector<8x8xf32>
    %19 = vector.shape_cast %16 : vector<8x8xf32> to vector<1x8x8xf32>
    tpu.vector_store %arg11[%c0_17, %c0_18, %c0_19], %19 {strides = array<i32>} : memref<4x8x8xf32, #tpu.memory_space<vmem>>, vector<1x8x8xf32>,
    %20 = vector.extract_strided_slice %9 {offsets = [0, 0], sizes = [8, 8], strides = [1, 1]} : vector<8x32xf32> to vector<8x8xf32>
    %c0_20 = arith.constant 0 : index
    %c0_21 = arith.constant 0 : index
    %c0_22 = arith.constant 0 : index
    %21 = vector.load %arg12[%c0_20, %c0_21, %c0_22] : memref<4x8x8xf32, #tpu.memory_space<vmem>>, vector<1x8x8xf32>
    %22 = vector.shape_cast %21 : vector<1x8x8xf32> to vector<8x8xf32>
    %23 = vector.shape_cast %20 : vector<8x8xf32> to vector<1x8x8xf32>
    tpu.vector_store %arg12[%c0_20, %c0_21, %c0_22], %23 {strides = array<i32>} : memref<4x8x8xf32, #tpu.memory_space<vmem>>, vector<1x8x8xf32>,
    %24 = vector.extract_strided_slice %11 {offsets = [0, 8], sizes = [8, 8], strides = [1, 1]} : vector<8x32xf32> to vector<8x8xf32>
    %c1 = arith.constant 1 : index
    %c0_23 = arith.constant 0 : index
    %c0_24 = arith.constant 0 : index
    %25 = vector.load %arg10[%c1, %c0_23, %c0_24] : memref<4x8x8xf32, #tpu.memory_space<vmem>>, vector<1x8x8xf32>
    %26 = vector.shape_cast %25 : vector<1x8x8xf32> to vector<8x8xf32>
    %27 = vector.shape_cast %24 : vector<8x8xf32> to vector<1x8x8xf32>
    tpu.vector_store %arg10[%c1, %c0_23, %c0_24], %27 {strides = array<i32>} : memref<4x8x8xf32, #tpu.memory_space<vmem>>, vector<1x8x8xf32>,
    %28 = vector.extract_strided_slice %7 {offsets = [0, 8], sizes = [8, 8], strides = [1, 1]} : vector<8x32xf32> to vector<8x8xf32>
    %c1_25 = arith.constant 1 : index
    %c0_26 = arith.constant 0 : index
    %c0_27 = arith.constant 0 : index
    %29 = vector.load %arg11[%c1_25, %c0_26, %c0_27] : memref<4x8x8xf32, #tpu.memory_space<vmem>>, vector<1x8x8xf32>
    %30 = vector.shape_cast %29 : vector<1x8x8xf32> to vector<8x8xf32>
    %31 = vector.shape_cast %28 : vector<8x8xf32> to vector<1x8x8xf32>
    tpu.vector_store %arg11[%c1_25, %c0_26, %c0_27], %31 {strides = array<i32>} : memref<4x8x8xf32, #tpu.memory_space<vmem>>, vector<1x8x8xf32>,
    %32 = vector.extract_strided_slice %9 {offsets = [0, 8], sizes = [8, 8], strides = [1, 1]} : vector<8x32xf32> to vector<8x8xf32>
    %c1_28 = arith.constant 1 : index
    %c0_29 = arith.constant 0 : index
    %c0_30 = arith.constant 0 : index
    %33 = vector.load %arg12[%c1_28, %c0_29, %c0_30] : memref<4x8x8xf32, #tpu.memory_space<vmem>>, vector<1x8x8xf32>
    %34 = vector.shape_cast %33 : vector<1x8x8xf32> to vector<8x8xf32>
    %35 = vector.shape_cast %32 : vector<8x8xf32> to vector<1x8x8xf32>
    tpu.vector_store %arg12[%c1_28, %c0_29, %c0_30], %35 {strides = array<i32>} : memref<4x8x8xf32, #tpu.memory_space<vmem>>, vector<1x8x8xf32>,
    %36 = vector.extract_strided_slice %11 {offsets = [0, 16], sizes = [8, 8], strides = [1, 1]} : vector<8x32xf32> to vector<8x8xf32>
    %c2 = arith.constant 2 : index
    %c0_31 = arith.constant 0 : index
    %c0_32 = arith.constant 0 : index
    %37 = vector.load %arg10[%c2, %c0_31, %c0_32] : memref<4x8x8xf32, #tpu.memory_space<vmem>>, vector<1x8x8xf32>
    %38 = vector.shape_cast %37 : vector<1x8x8xf32> to vector<8x8xf32>
    %39 = vector.shape_cast %36 : vector<8x8xf32> to vector<1x8x8xf32>
    tpu.vector_store %arg10[%c2, %c0_31, %c0_32], %39 {strides = array<i32>} : memref<4x8x8xf32, #tpu.memory_space<vmem>>, vector<1x8x8xf32>,
    %40 = vector.extract_strided_slice %7 {offsets = [0, 16], sizes = [8, 8], strides = [1, 1]} : vector<8x32xf32> to vector<8x8xf32>
    %c2_33 = arith.constant 2 : index
    %c0_34 = arith.constant 0 : index
    %c0_35 = arith.constant 0 : index
    %41 = vector.load %arg11[%c2_33, %c0_34, %c0_35] : memref<4x8x8xf32, #tpu.memory_space<vmem>>, vector<1x8x8xf32>
    %42 = vector.shape_cast %41 : vector<1x8x8xf32> to vector<8x8xf32>
    %43 = vector.shape_cast %40 : vector<8x8xf32> to vector<1x8x8xf32>
    tpu.vector_store %arg11[%c2_33, %c0_34, %c0_35], %43 {strides = array<i32>} : memref<4x8x8xf32, #tpu.memory_space<vmem>>, vector<1x8x8xf32>,
    %44 = vector.extract_strided_slice %9 {offsets = [0, 16], sizes = [8, 8], strides = [1, 1]} : vector<8x32xf32> to vector<8x8xf32>
    %c2_36 = arith.constant 2 : index
    %c0_37 = arith.constant 0 : index
    %c0_38 = arith.constant 0 : index
    %45 = vector.load %arg12[%c2_36, %c0_37, %c0_38] : memref<4x8x8xf32, #tpu.memory_space<vmem>>, vector<1x8x8xf32>
    %46 = vector.shape_cast %45 : vector<1x8x8xf32> to vector<8x8xf32>
    %47 = vector.shape_cast %44 : vector<8x8xf32> to vector<1x8x8xf32>
    tpu.vector_store %arg12[%c2_36, %c0_37, %c0_38], %47 {strides = array<i32>} : memref<4x8x8xf32, #tpu.memory_space<vmem>>, vector<1x8x8xf32>,
    %48 = vector.extract_strided_slice %11 {offsets = [0, 24], sizes = [8, 8], strides = [1, 1]} : vector<8x32xf32> to vector<8x8xf32>
    %c3 = arith.constant 3 : index
    %c0_39 = arith.constant 0 : index
    %c0_40 = arith.constant 0 : index
    %49 = vector.load %arg10[%c3, %c0_39, %c0_40] : memref<4x8x8xf32, #tpu.memory_space<vmem>>, vector<1x8x8xf32>
    %50 = vector.shape_cast %49 : vector<1x8x8xf32> to vector<8x8xf32>
    %51 = vector.shape_cast %48 : vector<8x8xf32> to vector<1x8x8xf32>
    tpu.vector_store %arg10[%c3, %c0_39, %c0_40], %51 {strides = array<i32>} : memref<4x8x8xf32, #tpu.memory_space<vmem>>, vector<1x8x8xf32>,
    %52 = vector.extract_strided_slice %7 {offsets = [0, 24], sizes = [8, 8], strides = [1, 1]} : vector<8x32xf32> to vector<8x8xf32>
    %c3_41 = arith.constant 3 : index
    %c0_42 = arith.constant 0 : index
    %c0_43 = arith.constant 0 : index
    %53 = vector.load %arg11[%c3_41, %c0_42, %c0_43] : memref<4x8x8xf32, #tpu.memory_space<vmem>>, vector<1x8x8xf32>
    %54 = vector.shape_cast %53 : vector<1x8x8xf32> to vector<8x8xf32>
    %55 = vector.shape_cast %52 : vector<8x8xf32> to vector<1x8x8xf32>
    tpu.vector_store %arg11[%c3_41, %c0_42, %c0_43], %55 {strides = array<i32>} : memref<4x8x8xf32, #tpu.memory_space<vmem>>, vector<1x8x8xf32>,
    %56 = vector.extract_strided_slice %9 {offsets = [0, 24], sizes = [8, 8], strides = [1, 1]} : vector<8x32xf32> to vector<8x8xf32>
    %c3_44 = arith.constant 3 : index
    %c0_45 = arith.constant 0 : index
    %c0_46 = arith.constant 0 : index
    %57 = vector.load %arg12[%c3_44, %c0_45, %c0_46] : memref<4x8x8xf32, #tpu.memory_space<vmem>>, vector<1x8x8xf32>
    %58 = vector.shape_cast %57 : vector<1x8x8xf32> to vector<8x8xf32>
    %59 = vector.shape_cast %56 : vector<8x8xf32> to vector<1x8x8xf32>
    tpu.vector_store %arg12[%c3_44, %c0_45, %c0_46], %59 {strides = array<i32>} : memref<4x8x8xf32, #tpu.memory_space<vmem>>, vector<1x8x8xf32>,
    %c0_47 = arith.constant 0 : index
    %c0_48 = arith.constant 0 : index
    %c0_49 = arith.constant 0 : index
    %60 = vector.load %arg10[%c0_47, %c0_48, %c0_49] : memref<4x8x8xf32, #tpu.memory_space<vmem>>, vector<4x8x8xf32>
    %c0_50 = arith.constant 0 : index
    %c0_51 = arith.constant 0 : index
    %c0_52 = arith.constant 0 : index
    %61 = vector.load %arg11[%c0_50, %c0_51, %c0_52] : memref<4x8x8xf32, #tpu.memory_space<vmem>>, vector<4x8x8xf32>
    %c0_53 = arith.constant 0 : index
    %c0_54 = arith.constant 0 : index
    %c0_55 = arith.constant 0 : index
    %62 = vector.load %arg12[%c0_53, %c0_54, %c0_55] : memref<4x8x8xf32, #tpu.memory_space<vmem>>, vector<4x8x8xf32>
    "tpu.trace_start"() <{level = 10 : i32, message = "hqd,hkd->hqk"}> : () -> ()
    %cst_56 = arith.constant dense<0.000000e+00> : vector<4x8x8xf32>
    %63 = tpu.matmul %60, %61, %cst_56 {dimension_numbers = #tpu.dot_dimension_numbers<[2], [2], [1], [1], [0, 0, 0, 1, 1, 1], [0], [0]>} : vector<4x8x8xf32>, vector<4x8x8xf32>, vector<4x8x8xf32> -> vector<4x8x8xf32>
    "tpu.trace_stop"() : () -> ()
    %cst_57 = arith.constant dense<0xFF800000> : vector<4x8xf32>
    %64 = vector.multi_reduction <maximumf>, %63, %cst_57 [2] : vector<4x8x8xf32> to vector<4x8xf32>
    %65 = vector.shape_cast %64 : vector<4x8xf32> to vector<4x8x1xf32>
    %66 = vector.broadcast %65 : vector<4x8x1xf32> to vector<4x8x8xf32>
    %67 = arith.subf %63, %66 : vector<4x8x8xf32>
    %68 = math.exp %67 : vector<4x8x8xf32>
    %cst_58 = arith.constant dense<0.000000e+00> : vector<4x8xf32>
    %69 = vector.multi_reduction <add>, %68, %cst_58 [2] : vector<4x8x8xf32> to vector<4x8xf32>
    %70 = vector.shape_cast %69 : vector<4x8xf32> to vector<4x8x1xf32>
    %71 = tpu.reciprocal %70 {approx = true} : vector<4x8x1xf32> -> vector<4x8x1xf32>
    %72 = vector.broadcast %71 : vector<4x8x1xf32> to vector<4x8x8xf32>
    %73 = arith.mulf %68, %72 : vector<4x8x8xf32>
    "tpu.trace_start"() <{level = 10 : i32, message = "hqk,hkd->hqd"}> : () -> ()
    %cst_59 = arith.constant dense<0.000000e+00> : vector<4x8x8xf32>
    %74 = tpu.matmul %73, %62, %cst_59 {dimension_numbers = #tpu.dot_dimension_numbers<[2], [1], [1], [2], [0, 0, 0, 1, 1, 2], [0], [0]>} : vector<4x8x8xf32>, vector<4x8x8xf32>, vector<4x8x8xf32> -> vector<4x8x8xf32>
    "tpu.trace_stop"() : () -> ()
    %c0_60 = arith.constant 0 : index
    %c0_61 = arith.constant 0 : index
    %c0_62 = arith.constant 0 : index
    %75 = vector.load %arg7[%c0_60, %c0_61, %c0_62] : memref<4x8x32xf32, #tpu.memory_space<vmem>>, vector<4x8x32xf32>
    "tpu.trace_start"() <{level = 10 : i32, message = "hqd,hde->hqe"}> : () -> ()
    %cst_63 = arith.constant dense<0.000000e+00> : vector<4x8x32xf32>
    %76 = tpu.matmul %74, %75, %cst_63 {dimension_numbers = #tpu.dot_dimension_numbers<[2], [1], [1], [2], [0, 0, 0, 1, 1, 2], [0], [0]>} : vector<4x8x8xf32>, vector<4x8x32xf32>, vector<4x8x32xf32> -> vector<4x8x32xf32>
    "tpu.trace_stop"() : () -> ()
    %cst_64 = arith.constant dense<0.000000e+00> : vector<8x32xf32>
    %77 = vector.multi_reduction <add>, %76, %cst_64 [0] : vector<4x8x32xf32> to vector<8x32xf32>
    %c0_65 = arith.constant 0 : index
    %c0_66 = arith.constant 0 : index
    %78 = vector.load %arg8[%c0_65, %c0_66] : memref<1x32xf32, #tpu.memory_space<vmem>>, vector<1x32xf32>
    %79 = vector.broadcast %78 : vector<1x32xf32> to vector<8x32xf32>
    %80 = arith.addf %77, %79 : vector<8x32xf32>
    %c0_67 = arith.constant 0 : index
    %c0_68 = arith.constant 0 : index
    %c0_69 = arith.constant 0 : index
    %81 = vector.load %arg9[%c0_67, %c0_68, %c0_69] : memref<1x8x32xf32, #tpu.memory_space<vmem>>, vector<1x8x32xf32>
    %82 = vector.shape_cast %81 : vector<1x8x32xf32> to vector<8x32xf32>
    %83 = vector.shape_cast %80 : vector<8x32xf32> to vector<1x8x32xf32>
    tpu.vector_store %arg9[%c0_67, %c0_68, %c0_69], %83 {strides = array<i32>} : memref<1x8x32xf32, #tpu.memory_space<vmem>>, vector<1x8x32xf32>,
    return
  }
  func.func @transform_0(%arg0: i32, %arg1: i32) -> (i32, i32, i32) {
    %c0_i32 = arith.constant 0 : i32
    %c0_i32_0 = arith.constant 0 : i32
    return %arg0, %arg1, %c0_i32 : i32, i32, i32
  }
  func.func @transform_1(%arg0: i32, %arg1: i32) -> (i32, i32, i32) {
    %c0_i32 = arith.constant 0 : i32
    %c0_i32_0 = arith.constant 0 : i32
    %c0_i32_1 = arith.constant 0 : i32
    return %arg0, %c0_i32, %c0_i32_0 : i32, i32, i32
  }
  func.func @transform_2(%arg0: i32, %arg1: i32) -> (i32, i32) {
    %c0_i32 = arith.constant 0 : i32
    %c0_i32_0 = arith.constant 0 : i32
    %c0_i32_1 = arith.constant 0 : i32
    return %c0_i32, %c0_i32_0 : i32, i32
  }
  func.func @transform_3(%arg0: i32, %arg1: i32) -> (i32, i32) {
    %c0_i32 = arith.constant 0 : i32
    %c0_i32_0 = arith.constant 0 : i32
    %c0_i32_1 = arith.constant 0 : i32
    return %c0_i32, %c0_i32_0 : i32, i32
  }
  func.func @transform_4(%arg0: i32, %arg1: i32) -> (i32, i32) {
    %c0_i32 = arith.constant 0 : i32
    %c0_i32_0 = arith.constant 0 : i32
    %c0_i32_1 = arith.constant 0 : i32
    return %c0_i32, %c0_i32_0 : i32, i32
  }
  func.func @transform_5(%arg0: i32, %arg1: i32) -> (i32, i32, i32) {
    %c0_i32 = arith.constant 0 : i32
    %c0_i32_0 = arith.constant 0 : i32
    %c0_i32_1 = arith.constant 0 : i32
    %c0_i32_2 = arith.constant 0 : i32
    return %c0_i32, %c0_i32_0, %c0_i32_1 : i32, i32, i32
  }
  func.func @transform_6(%arg0: i32, %arg1: i32) -> (i32, i32) {
    %c0_i32 = arith.constant 0 : i32
    %c0_i32_0 = arith.constant 0 : i32
    %c0_i32_1 = arith.constant 0 : i32
    return %c0_i32, %c0_i32_0 : i32, i32
  }
  func.func @transform_7(%arg0: i32, %arg1: i32) -> (i32, i32, i32) {
    %c0_i32 = arith.constant 0 : i32
    %c0_i32_0 = arith.constant 0 : i32
    return %arg0, %arg1, %c0_i32 : i32, i32, i32
  }
}

</mosaic_0001>

<llo_original>
// kernel: tpu_custom_call.1
$region0: #{tpu_custom_call.1}
  #allocation0 [shape = 'u32[]', space=smem, size = 0x4, offset = 0x4, fixed_abs, tag = 'smem constant byte address 0x4 - core index']
  #allocation1 [shape = 'u32[144,128]{1,0:T(1,128)}', space=vmem, size = 0x12000, scoped, tag = 'internal scratch']
  #allocation2 [shape = 'f32[4,8,8]{2,1,0:T(8,128)}', space=vmem, size = 0x4000, scoped, tag = 'scratch operand']
  #allocation3 [shape = 'f32[4,8,8]{2,1,0:T(8,128)}', space=vmem, size = 0x4000, scoped, tag = 'scratch operand']
  #allocation4 [shape = 'f32[4,8,8]{2,1,0:T(8,128)}', space=vmem, size = 0x4000, scoped, tag = 'scratch operand']
  %s0 = inlined_call_operand.hbm [shape: f32[2,8,32], index: 0, kind: input, shape index: {}]
  %s1 = inlined_call_operand.hbm [shape: f32[2,8,32], index: 1, kind: input, shape index: {}]
  %s2 = inlined_call_operand.hbm [shape: f32[32,32], index: 2, kind: input, shape index: {}]
  %s3 = inlined_call_operand.hbm [shape: f32[32,32], index: 3, kind: input, shape index: {}]
  %s4 = inlined_call_operand.hbm [shape: f32[32,32], index: 4, kind: input, shape index: {}]
  %s5 = inlined_call_operand.hbm [shape: f32[4,8,32], index: 5, kind: input, shape index: {}]
  %s6 = inlined_call_operand.vmem [shape: f32[1,32], index: 6, kind: input, shape index: {}]
  %s7 = inlined_call_operand.hbm [shape: f32[2,8,32], index: 7, kind: output, shape index: {}]
  %s8 = sld [smem:[#allocation0]]
  $region85: #{tpu_custom_call.1} parent=0
    _
  %s10 = ssub.s32 1, %s8
  %s11 = scalar_select 0, %s10, %s8
  $region1: #{tpu_custom_call.1} parent=0
    #allocation5 [shape = 'u8[8192]{0}', space=vmem, size = 0x2000, scoped, tag = 'input window, operand 0']
    #allocation6 [shape = 's32[2]{0}', space=sflag, size = 0x8, scoped, tag = 'scoped memory for tpu_custom_call.1']
    #allocation7 [shape = 's32[2]{0}', space=sflag, size = 0x8, scoped, tag = 'scoped memory for tpu_custom_call.1']
    #allocation8 [shape = 'u8[8192]{0}', space=vmem, size = 0x2000, scoped, tag = 'input window, operand 1']
    #allocation9 [shape = 's32[2]{0}', space=sflag, size = 0x8, scoped, tag = 'scoped memory for tpu_custom_call.1']
    #allocation10 [shape = 'u8[16384]{0}', space=vmem, size = 0x4000, scoped, tag = 'input window, operand 2, single buffered']
    #allocation11 [shape = 'u8[16384]{0}', space=vmem, size = 0x4000, scoped, tag = 'input window, operand 3, single buffered']
    #allocation12 [shape = 's32[1]{0}', space=sflag, size = 0x4, scoped, tag = 'scoped memory for tpu_custom_call.1']
    #allocation13 [shape = 'u8[16384]{0}', space=vmem, size = 0x4000, scoped, tag = 'input window, operand 4, single buffered']
    #allocation14 [shape = 'u8[16384]{0}', space=vmem, size = 0x4000, scoped, tag = 'input window, operand 5, single buffered']
    #allocation15 [shape = 's32[1]{0}', space=sflag, size = 0x4, scoped, tag = 'scoped memory for tpu_custom_call.1']
    #allocation16 [shape = 'u8[8192]{0}', space=vmem, size = 0x2000, scoped, tag = 'output window, operand 0']
    %12 = vsyncpa [#allocation6], 0
    %s13 = scalar_lea.sflag [#allocation6], 1
    %14 = vsyncpa %s13, 0
    %15 = vsyncpa [#allocation9], 0
    %s16 = scalar_lea.sflag [#allocation9], 1
    %17 = vsyncpa %s16, 0
    %18 = vsyncpa [#allocation12], 0
    %19 = vsyncpa [#allocation15], 0
    %20 = vsyncpa [#allocation7], 0
    %s21 = scalar_lea.sflag [#allocation7], 1
    %22 = vsyncpa %s21, 0
    loop: start=0, step=1, limit=4
    $region2: #{tpu_custom_call.1} parent=1 // loop_pre_header
      _
    $region3: #{tpu_custom_call.1} parent=1 // loop_header
      %s24 = sphi 0, %s28
      %p25 = scmp.ge.s32.totalorder %s24, 4
      %s31 = sphi 0, %s43
      %s32 = sphi 0, %s39
      %s33 = sphi 0, %s31
      %s34 = sphi 0, %s32
      %s35 = sphi 0, %s33
      %s36 = sphi 0, %s34
      %s48 = sphi 0, %s50
      %s51 = sphi 0, %s48
      %s52 = sphi 0, %s51
      %s68 = sphi 0, %s52
      %s74 = sphi 0, %s76
      %s77 = sphi 0, %s74
      %s78 = sphi 0, %s77
      %s94 = sphi 0, %s78
      %s98 = sphi 0, %s98
      %s100 = sphi 0, %s98
      %s101 = sphi 0, %s100
      %s115 = sphi 0, %s101
      %s119 = sphi 0, %s119
      %s121 = sphi 0, %s119
      %s122 = sphi 0, %s121
      %s136 = sphi 0, %s122
      %s140 = sphi 0, %s140
      %s142 = sphi 0, %s140
      %s143 = sphi 0, %s142
      %s157 = sphi 0, %s143
      %s161 = sphi 0, %s161
      %s163 = sphi 0, %s161
      %s164 = sphi 0, %s163
      %s178 = sphi 0, %s164
      %s182 = sphi 0, %s182
      %s184 = sphi 0, %s182
      %s185 = sphi 0, %s184
      %s199 = sphi 0, %s185
      %s207 = sphi 0, %s209
      %s210 = sphi 0, %s207
      %s211 = sphi 0, %s210
      %s227 = sphi 0, %s211
    $region4: #{tpu_custom_call.1} parent=1 // loop_header_branch
      %27 = sbr.rel (%p25) target = $region8
    $region5: #{tpu_custom_call.1} parent=1 // loop_body
      %s29 = ssub.s32 %s24, 1
      %s30 = ssub.s32 %s24, 2
      %s37 = sadd.s32 1, %s32
      %p38 = scmp.ge.s32.totalorder %s37, 1
      %s39 = scalar_select %p38, 0, %s37
      %s40 = sadd.s32 1, %s31
      %s41 = scalar_select %p38, %s40, %s31
      %p42 = scmp.ge.s32.totalorder %s41, 2
      %s43 = scalar_select %p42, 0, %s41
      %s44 = ssub.s32 %s31, %s43
      %s45 = ssub.s32 %s32, %s39
      %s46 = sor.u32 %s44, %s45
      %p47 = scmp.eq.s32.totalorder %s46, 0
      %s49 = sadd.s32 %s48, 1
      %s50 = scalar_select %p47, %s48, %s49
      %p53 = pneg %p47
      %p54 = scmp.eq.s32.totalorder %s24, 1
      %p55 = por %p53, %p54
      %p56 = scmp.ne.s32.totalorder %s48, %s51
      %p57 = scmp.eq.s32.totalorder %s24, 0
      %p58 = por %p56, %p57
      %p59 = scmp.ne.s32.totalorder %s48, %s51
      %p60 = scmp.eq.s32.totalorder %s29, 1
      %p61 = por %p59, %p60
      %p62 = scmp.ne.s32.totalorder %s51, %s52
      %p63 = scmp.eq.s32.totalorder %s29, 0
      %p64 = por %p62, %p63
      %p65 = scmp.ne.s32.totalorder %s51, %s52
      %p66 = scmp.eq.s32.totalorder %s30, 1
      %p67 = por %p65, %p66
      %p69 = scmp.ne.s32.totalorder %s52, %s68
      %p70 = scmp.eq.s32.totalorder %s30, 0
      %p71 = por %p69, %p70
      %s72 = ssub.s32 %s31, %s43
      %p73 = scmp.eq.s32.totalorder %s72, 0
      %s75 = sadd.s32 %s74, 1
      %s76 = scalar_select %p73, %s74, %s75
      %p79 = pneg %p73
      %p80 = scmp.eq.s32.totalorder %s24, 1
      %p81 = por %p79, %p80
      %p82 = scmp.ne.s32.totalorder %s74, %s77
      %p83 = scmp.eq.s32.totalorder %s24, 0
      %p84 = por %p82, %p83
      %p85 = scmp.ne.s32.totalorder %s74, %s77
      %p86 = scmp.eq.s32.totalorder %s29, 1
      %p87 = por %p85, %p86
      %p88 = scmp.ne.s32.totalorder %s77, %s78
      %p89 = scmp.eq.s32.totalorder %s29, 0
      %p90 = por %p88, %p89
      %p91 = scmp.ne.s32.totalorder %s77, %s78
      %p92 = scmp.eq.s32.totalorder %s30, 1
      %p93 = por %p91, %p92
      %p95 = scmp.ne.s32.totalorder %s78, %s94
      %p96 = scmp.eq.s32.totalorder %s30, 0
      %p97 = por %p95, %p96
      %s99 = sadd.s32 %s98, 1
      %p102 = scmp.eq.s32.totalorder %s24, 1
      %p103 = scmp.ne.s32.totalorder %s98, %s100
      %p104 = scmp.eq.s32.totalorder %s24, 0
      %p105 = por %p103, %p104
      %p106 = scmp.ne.s32.totalorder %s98, %s100
      %p107 = scmp.eq.s32.totalorder %s29, 1
      %p108 = por %p106, %p107
      %p109 = scmp.ne.s32.totalorder %s100, %s101
      %p110 = scmp.eq.s32.totalorder %s29, 0
      %p111 = por %p109, %p110
      %p112 = scmp.ne.s32.totalorder %s100, %s101
      %p113 = scmp.eq.s32.totalorder %s30, 1
      %p114 = por %p112, %p113
      %p116 = scmp.ne.s32.totalorder %s101, %s115
      %p117 = scmp.eq.s32.totalorder %s30, 0
      %p118 = por %p116, %p117
      %s120 = sadd.s32 %s119, 1
      %p123 = scmp.eq.s32.totalorder %s24, 1
      %p124 = scmp.ne.s32.totalorder %s119, %s121
      %p125 = scmp.eq.s32.totalorder %s24, 0
      %p126 = por %p124, %p125
      %p127 = scmp.ne.s32.totalorder %s119, %s121
      %p128 = scmp.eq.s32.totalorder %s29, 1
      %p129 = por %p127, %p128
      %p130 = scmp.ne.s32.totalorder %s121, %s122
      %p131 = scmp.eq.s32.totalorder %s29, 0
      %p132 = por %p130, %p131
      %p133 = scmp.ne.s32.totalorder %s121, %s122
      %p134 = scmp.eq.s32.totalorder %s30, 1
      %p135 = por %p133, %p134
      %p137 = scmp.ne.s32.totalorder %s122, %s136
      %p138 = scmp.eq.s32.totalorder %s30, 0
      %p139 = por %p137, %p138
      %s141 = sadd.s32 %s140, 1
      %p144 = scmp.eq.s32.totalorder %s24, 1
      %p145 = scmp.ne.s32.totalorder %s140, %s142
      %p146 = scmp.eq.s32.totalorder %s24, 0
      %p147 = por %p145, %p146
      %p148 = scmp.ne.s32.totalorder %s140, %s142
      %p149 = scmp.eq.s32.totalorder %s29, 1
      %p150 = por %p148, %p149
      %p151 = scmp.ne.s32.totalorder %s142, %s143
      %p152 = scmp.eq.s32.totalorder %s29, 0
      %p153 = por %p151, %p152
      %p154 = scmp.ne.s32.totalorder %s142, %s143
      %p155 = scmp.eq.s32.totalorder %s30, 1
      %p156 = por %p154, %p155
      %p158 = scmp.ne.s32.totalorder %s143, %s157
      %p159 = scmp.eq.s32.totalorder %s30, 0
      %p160 = por %p158, %p159
      %s162 = sadd.s32 %s161, 1
      %p165 = scmp.eq.s32.totalorder %s24, 1
      %p166 = scmp.ne.s32.totalorder %s161, %s163
      %p167 = scmp.eq.s32.totalorder %s24, 0
      %p168 = por %p166, %p167
      %p169 = scmp.ne.s32.totalorder %s161, %s163
      %p170 = scmp.eq.s32.totalorder %s29, 1
      %p171 = por %p169, %p170
      %p172 = scmp.ne.s32.totalorder %s163, %s164
      %p173 = scmp.eq.s32.totalorder %s29, 0
      %p174 = por %p172, %p173
      %p175 = scmp.ne.s32.totalorder %s163, %s164
      %p176 = scmp.eq.s32.totalorder %s30, 1
      %p177 = por %p175, %p176
      %p179 = scmp.ne.s32.totalorder %s164, %s178
      %p180 = scmp.eq.s32.totalorder %s30, 0
      %p181 = por %p179, %p180
      %s183 = sadd.s32 %s182, 1
      %p186 = scmp.eq.s32.totalorder %s24, 1
      %p187 = scmp.ne.s32.totalorder %s182, %s184
      %p188 = scmp.eq.s32.totalorder %s24, 0
      %p189 = por %p187, %p188
      %p190 = scmp.ne.s32.totalorder %s182, %s184
      %p191 = scmp.eq.s32.totalorder %s29, 1
      %p192 = por %p190, %p191
      %p193 = scmp.ne.s32.totalorder %s184, %s185
      %p194 = scmp.eq.s32.totalorder %s29, 0
      %p195 = por %p193, %p194
      %p196 = scmp.ne.s32.totalorder %s184, %s185
      %p197 = scmp.eq.s32.totalorder %s30, 1
      %p198 = por %p196, %p197
      %p200 = scmp.ne.s32.totalorder %s185, %s199
      %p201 = scmp.eq.s32.totalorder %s30, 0
      %p202 = por %p200, %p201
      %s203 = ssub.s32 %s31, %s43
      %s204 = ssub.s32 %s32, %s39
      %s205 = sor.u32 %s203, %s204
      %p206 = scmp.eq.s32.totalorder %s205, 0
      %s208 = sadd.s32 %s207, 1
      %s209 = scalar_select %p206, %s207, %s208
      %p212 = pneg %p206
      %p213 = scmp.eq.s32.totalorder %s24, 1
      %p214 = por %p212, %p213
      %p215 = scmp.ne.s32.totalorder %s207, %s210
      %p216 = scmp.eq.s32.totalorder %s24, 0
      %p217 = por %p215, %p216
      %p218 = scmp.ne.s32.totalorder %s207, %s210
      %p219 = scmp.eq.s32.totalorder %s29, 1
      %p220 = por %p218, %p219
      %p221 = scmp.ne.s32.totalorder %s210, %s211
      %p222 = scmp.eq.s32.totalorder %s29, 0
      %p223 = por %p221, %p222
      %p224 = scmp.ne.s32.totalorder %s210, %s211
      %p225 = scmp.eq.s32.totalorder %s30, 1
      %p226 = por %p224, %p225
      %p228 = scmp.ne.s32.totalorder %s211, %s227
      %p229 = scmp.eq.s32.totalorder %s30, 0
      %p230 = por %p228, %p229
      %p231 = scmp.le.s32.totalorder 1, %s24
      %p232 = scmp.lt.s32.totalorder %s24, 3
      %p233 = pnand %p231, %p232
      %p234 = pneg %p233
      // Predicated region
      $region9: #{tpu_custom_call.1} parent=5 // pred_check
        _
      $region10: #{tpu_custom_call.1} parent=5 // pred_check_branch
        %236 = sbr.rel (%p233) target = $region12
      $region11: #{tpu_custom_call.1} parent=5 // pred_region
        %s237 = ssub.s32 %s24, 1
        // Predicated region
        $region13: #{tpu_custom_call.1} parent=11 // pred_check
          %p238 = pneg %p111
        $region14: #{tpu_custom_call.1} parent=11 // pred_check_branch
          %240 = sbr.rel (%p238) target = $region16
        $region15: #{tpu_custom_call.1} parent=11 // pred_region
          %s242 = ssub.s32 512, 512
          %243 = vsyncadd [#allocation9], %s242
          %s244 = sshll.u32 [#allocation10], 4
          %s245 = int_to_ptr.vmem [resolvable:$true] %s244
          %250 = dma.hbm_to_vmem [thread:$0]  %s2, 512, %s245, [#allocation9], 128, 128, 8
        $region16: #{tpu_custom_call.1} parent=11 // pred_fallthru
          _
        // Predicated region
        $region17: #{tpu_custom_call.1} parent=11 // pred_check
          %p251 = pneg %p132
        $region18: #{tpu_custom_call.1} parent=11 // pred_check_branch
          %253 = sbr.rel (%p251) target = $region20
        $region19: #{tpu_custom_call.1} parent=11 // pred_region
          %s255 = ssub.s32 512, 512
          %256 = vsyncadd [#allocation12], %s255
          %s257 = sshll.u32 [#allocation11], 4
          %s258 = int_to_ptr.vmem [resolvable:$true] %s257
          %263 = dma.hbm_to_vmem [thread:$0]  %s3, 512, %s258, [#allocation12], 128, 128, 8
        $region20: #{tpu_custom_call.1} parent=11 // pred_fallthru
          _
        // Predicated region
        $region21: #{tpu_custom_call.1} parent=11 // pred_check
          %p264 = pneg %p153
        $region22: #{tpu_custom_call.1} parent=11 // pred_check_branch
          %266 = sbr.rel (%p264) target = $region24
        $region23: #{tpu_custom_call.1} parent=11 // pred_region
          %s268 = ssub.s32 512, 512
          %269 = vsyncadd [#allocation12], %s268
          %s270 = sshll.u32 [#allocation13], 4
          %s271 = int_to_ptr.vmem [resolvable:$true] %s270
          %276 = dma.hbm_to_vmem [thread:$0]  %s4, 512, %s271, [#allocation12], 128, 128, 8
        $region24: #{tpu_custom_call.1} parent=11 // pred_fallthru
          _
        // Predicated region
        $region25: #{tpu_custom_call.1} parent=11 // pred_check
          %p277 = pneg %p174
        $region26: #{tpu_custom_call.1} parent=11 // pred_check_branch
          %279 = sbr.rel (%p277) target = $region28
        $region27: #{tpu_custom_call.1} parent=11 // pred_region
          %s281 = ssub.s32 512, 512
          %282 = vsyncadd [#allocation15], %s281
          %s283 = sshll.u32 [#allocation14], 4
          %s284 = int_to_ptr.vmem [resolvable:$true] %s283
          %289 = dma.hbm_to_vmem [thread:$0]  %s5, 512, %s284, [#allocation15], 128, 128, 8
        $region28: #{tpu_custom_call.1} parent=11 // pred_fallthru
          _
        // Predicated region
        $region29: #{tpu_custom_call.1} parent=11 // pred_check
          %p290 = pneg %p195
        $region30: #{tpu_custom_call.1} parent=11 // pred_check_branch
          %292 = sbr.rel (%p290) target = $region32
        $region31: #{tpu_custom_call.1} parent=11 // pred_region
          _
        $region32: #{tpu_custom_call.1} parent=11 // pred_fallthru
          _
      $region12: #{tpu_custom_call.1} parent=5 // pred_fallthru
        _
      %p293 = scmp.lt.s32.totalorder %s24, 2
      // Predicated region
      $region33: #{tpu_custom_call.1} parent=5 // pred_check
        %p294 = pneg %p293
      $region34: #{tpu_custom_call.1} parent=5 // pred_check_branch
        %296 = sbr.rel (%p294) target = $region36
      $region35: #{tpu_custom_call.1} parent=5 // pred_region
        // Predicated region
        $region37: #{tpu_custom_call.1} parent=35 // pred_check
          %p297 = pneg %p58
        $region38: #{tpu_custom_call.1} parent=35 // pred_check_branch
          %299 = sbr.rel (%p297) target = $region40
        $region39: #{tpu_custom_call.1} parent=35 // pred_region
          %s300 = sand.u32 %s48, 1
          %s301 = scalar_lea.sflag [#allocation6], %s300
          %s302 = sand.u32 %s48, 1
          %s303 = smul.addr %s302, 8
          %s304 = scalar_lea.vmem [#allocation5], %s303
          %s306 = ssub.s32 128, 128
          %307 = vsyncadd %s301, %s306
          %s308 = sadd.s32 %s32, %s31
          %s309 = smul.addr %s308, 128
          %s310 = scalar_lea.hbm %s0, %s309
          %s312 = sshll.u32 %s304, 4
          %s313 = int_to_ptr.vmem [resolvable:$true] %s312
          %315 = dma.hbm_to_vmem [thread:$0]  %s310, 128, %s313, %s301
        $region40: #{tpu_custom_call.1} parent=35 // pred_fallthru
          _
        // Predicated region
        $region41: #{tpu_custom_call.1} parent=35 // pred_check
          %p316 = pneg %p84
        $region42: #{tpu_custom_call.1} parent=35 // pred_check_branch
          %318 = sbr.rel (%p316) target = $region44
        $region43: #{tpu_custom_call.1} parent=35 // pred_region
          %s319 = sand.u32 %s24, 1
          %s320 = scalar_lea.sflag [#allocation9], %s319
          %s321 = sand.u32 %s74, 1
          %s322 = smul.addr %s321, 8
          %s323 = scalar_lea.vmem [#allocation8], %s322
          %s325 = ssub.s32 128, 128
          %326 = vsyncadd %s320, %s325
          %s327 = smul.addr %s31, 128
          %s328 = scalar_lea.hbm %s1, %s327
          %s330 = sshll.u32 %s323, 4
          %s331 = int_to_ptr.vmem [resolvable:$true] %s330
          %333 = dma.hbm_to_vmem [thread:$0]  %s328, 128, %s331, %s320
        $region44: #{tpu_custom_call.1} parent=35 // pred_fallthru
          _
      $region36: #{tpu_custom_call.1} parent=5 // pred_fallthru
        _
      %p334 = scmp.le.s32.totalorder 1, %s24
      %p335 = scmp.lt.s32.totalorder %s24, 3
      %p336 = pnand %p334, %p335
      %p337 = pneg %p336
      // Predicated region
      $region45: #{tpu_custom_call.1} parent=5 // pred_check
        _
      $region46: #{tpu_custom_call.1} parent=5 // pred_check_branch
        %339 = sbr.rel (%p336) target = $region48
      $region47: #{tpu_custom_call.1} parent=5 // pred_region
        %s340 = ssub.s32 %s24, 1
        %s341 = sand.u32 %s51, 1
        %s342 = scalar_lea.sflag [#allocation6], %s341
        %s343 = sand.u32 %s51, 1
        %s344 = smul.addr %s343, 8
        %s345 = scalar_lea.vmem [#allocation5], %s344
        // Predicated region
        $region49: #{tpu_custom_call.1} parent=47 // pred_check
          %p346 = pneg %p64
        $region50: #{tpu_custom_call.1} parent=47 // pred_check_branch
          %348 = sbr.rel (%p346) target = $region52
        $region51: #{tpu_custom_call.1} parent=47 // pred_region
          %349 = dma.done %s342, 128
        $region52: #{tpu_custom_call.1} parent=47 // pred_fallthru
          _
        %s350 = sand.u32 %s29, 1
        %s351 = scalar_lea.sflag [#allocation9], %s350
        %s352 = sand.u32 %s77, 1
        %s353 = smul.addr %s352, 8
        %s354 = scalar_lea.vmem [#allocation8], %s353
        // Predicated region
        $region53: #{tpu_custom_call.1} parent=47 // pred_check
          %p355 = pneg %p90
        $region54: #{tpu_custom_call.1} parent=47 // pred_check_branch
          %357 = sbr.rel (%p355) target = $region56
        $region55: #{tpu_custom_call.1} parent=47 // pred_region
          %358 = dma.done %s351, 128
        $region56: #{tpu_custom_call.1} parent=47 // pred_fallthru
          _
        // Predicated region
        $region57: #{tpu_custom_call.1} parent=47 // pred_check
          %p359 = pneg %p111
        $region58: #{tpu_custom_call.1} parent=47 // pred_check_branch
          %361 = sbr.rel (%p359) target = $region60
        $region59: #{tpu_custom_call.1} parent=47 // pred_region
          %362 = dma.done [#allocation9], 512
        $region60: #{tpu_custom_call.1} parent=47 // pred_fallthru
          _
        // Predicated region
        $region61: #{tpu_custom_call.1} parent=47 // pred_check
          %p363 = pneg %p132
        $region62: #{tpu_custom_call.1} parent=47 // pred_check_branch
          %365 = sbr.rel (%p363) target = $region64
        $region63: #{tpu_custom_call.1} parent=47 // pred_region
          %366 = dma.done [#allocation12], 512
        $region64: #{tpu_custom_call.1} parent=47 // pred_fallthru
          _
        // Predicated region
        $region65: #{tpu_custom_call.1} parent=47 // pred_check
          %p367 = pneg %p153
        $region66: #{tpu_custom_call.1} parent=47 // pred_check_branch
          %369 = sbr.rel (%p367) target = $region68
        $region67: #{tpu_custom_call.1} parent=47 // pred_region
          %370 = dma.done [#allocation12], 512
        $region68: #{tpu_custom_call.1} parent=47 // pred_fallthru
          _
        // Predicated region
        $region69: #{tpu_custom_call.1} parent=47 // pred_check
          %p371 = pneg %p174
        $region70: #{tpu_custom_call.1} parent=47 // pred_check_branch
          %373 = sbr.rel (%p371) target = $region72
        $region71: #{tpu_custom_call.1} parent=47 // pred_region
          %374 = dma.done [#allocation15], 512
        $region72: #{tpu_custom_call.1} parent=47 // pred_fallthru
          _
        %s375 = sand.u32 %s51, 1
        %s376 = scalar_lea.sflag [#allocation6], %s375
        %s377 = sand.u32 %s51, 1
        %s378 = smul.addr %s377, 8
        %s379 = scalar_lea.vmem [#allocation5], %s378
        %p380 = pneg %p64
        %p381 = pneg %p61
        %s382 = sand.u32 %s29, 1
        %s383 = scalar_lea.sflag [#allocation9], %s382
        %s384 = sand.u32 %s77, 1
        %s385 = smul.addr %s384, 8
        %s386 = scalar_lea.vmem [#allocation8], %s385
        %p387 = pneg %p90
        %p388 = pneg %p87
        %p389 = pneg %p111
        %p390 = pneg %p108
        %p391 = pneg %p132
        %p392 = pneg %p129
        %p393 = pneg %p153
        %p394 = pneg %p150
        %p395 = pneg %p174
        %p396 = pneg %p171
        %p397 = pneg %p195
        %p398 = pneg %p192
        %p399 = pneg %p223
        %p400 = pneg %p220
        %s401 = sand.u32 %s210, 1
        %s402 = scalar_lea.sflag [#allocation7], %s401
        %s403 = sand.u32 %s210, 1
        %s404 = smul.addr %s403, 8
        %s405 = scalar_lea.vmem [#allocation16], %s404
        %v406 = vld [vmem:[%s345] sm:$0xff]
        %v407 = vld [vmem:[%s354] sm:$0xff]
        %v408 = vld [vmem:[#allocation10] sm:$0xff]
        %v409 = vld [vmem:[#allocation10 + $0x8] sm:$0xff]
        %v410 = vld [vmem:[#allocation10 + $0x10] sm:$0xff]
        %v411 = vld [vmem:[#allocation10 + $0x18] sm:$0xff]
        %vm412 = vcmask 261120
        %v414 = vsel %vm412, %v406, 0
        %416 = vmatprep.subr.mxu0 0.0
        %417 = vmatpush1.msra.mxu0 0.0
        %418 = vmatprep.subr.mxu0 0.0
        %419 = vmatpush1.msra.mxu0 0.0
        %420 = vmatprep.subr.mxu0 0.0
        %421 = vmatpush1.msra.mxu0 0.0
        %422 = vmatprep.subr.mxu0 0.0
        %423 = vmatpush1.msra.mxu0 0.0
        %424 = vmatprep.subr.mxu0 0.0
        %425 = vmatpush1.msra.mxu0 0.0
        %426 = vmatprep.subr.mxu0 0.0
        %427 = vmatpush1.msra.mxu0 0.0
        %428 = vmatprep.subr.mxu0 0.0
        %429 = vmatpush1.msra.mxu0 0.0
        %430 = vmatprep.subr.mxu0 0.0
        %431 = vmatpush1.msra.mxu0 0.0
        %432 = vmatprep.subr.mxu0 0.0
        %433 = vmatpush1.msra.mxu0 0.0
        %434 = vmatprep.subr.mxu0 0.0
        %435 = vmatpush1.msra.mxu0 0.0
        %436 = vmatprep.subr.mxu0 0.0
        %437 = vmatpush1.msra.mxu0 0.0
        %438 = vmatprep.subr.mxu0 0.0
        %439 = vmatpush1.msra.mxu0 0.0
        %440 = vmatprep.subr.mxu0 0.0
        %441 = vmatpush1.msra.mxu0 %v411
        %442 = vmatprep.subr.mxu0 0.0
        %443 = vmatpush1.msra.mxu0 %v410
        %444 = vmatprep.subr.mxu0 0.0
        %445 = vmatpush1.msra.mxu0 %v409
        %446 = vmatprep.subr.mxu0 0.0
        %447 = vmatpush1.msra.mxu0 %v408
        %448 = vmatprep.subr.mxu0 0.0
        %449 = vmatpush2.msra.mxu0 0.0
        %450 = vmatprep.subr.mxu0 0.0
        %451 = vmatpush2.msra.mxu0 0.0
        %452 = vmatprep.subr.mxu0 0.0
        %453 = vmatpush2.msra.mxu0 0.0
        %454 = vmatprep.subr.mxu0 0.0
        %455 = vmatpush2.msra.mxu0 0.0
        %456 = vmatprep.subr.mxu0 0.0
        %457 = vmatpush2.msra.mxu0 0.0
        %458 = vmatprep.subr.mxu0 0.0
        %459 = vmatpush2.msra.mxu0 0.0
        %460 = vmatprep.subr.mxu0 0.0
        %461 = vmatpush2.msra.mxu0 0.0
        %462 = vmatprep.subr.mxu0 0.0
        %463 = vmatpush2.msra.mxu0 0.0
        %464 = vmatprep.subr.mxu0 0.0
        %465 = vmatpush2.msra.mxu0 0.0
        %466 = vmatprep.subr.mxu0 0.0
        %467 = vmatpush2.msra.mxu0 0.0
        %468 = vmatprep.subr.mxu0 0.0
        %469 = vmatpush2.msra.mxu0 0.0
        %470 = vmatprep.subr.mxu0 0.0
        %471 = vmatpush2.msra.mxu0 0.0
        %472 = vmatprep.subr.mxu0 0.0
        %473 = vmatpush2.msra.mxu0 0.0
        %474 = vmatprep.subr.mxu0 0.0
        %475 = vmatpush2.msra.mxu0 0.0
        %476 = vmatprep.subr.mxu0 0.0
        %477 = vmatpush2.msra.mxu0 0.0
        %478 = vmatprep.subr.mxu0 0.0
        %479 = vmatpush2.msra.mxu0 0.0
        %480 = vmatprep.mubr.f32.mxu0 0.0
        %481 = vmatmul.mubr.f32.gmra.mxu0 %v414
        %v482 = vpop.f32.mrf.mxu0
        %v483 = vadd.f32 0.0, %v482
        %v484 = vpop.f32.mrf.mxu0
        %485 = vdwg.mxu0
        %v486 = vld [vmem:[#allocation11] sm:$0xff]
        %v487 = vld [vmem:[#allocation11 + $0x8] sm:$0xff]
        %v488 = vld [vmem:[#allocation11 + $0x10] sm:$0xff]
        %v489 = vld [vmem:[#allocation11 + $0x18] sm:$0xff]
        %v491 = vsel %vm412, %v407, 0
        %493 = vmatprep.subr.mxu0 0.0
        %494 = vmatpush1.msra.mxu0 0.0
        %495 = vmatprep.subr.mxu0 0.0
        %496 = vmatpush1.msra.mxu0 0.0
        %497 = vmatprep.subr.mxu0 0.0
        %498 = vmatpush1.msra.mxu0 0.0
        %499 = vmatprep.subr.mxu0 0.0
        %500 = vmatpush1.msra.mxu0 0.0
        %501 = vmatprep.subr.mxu0 0.0
        %502 = vmatpush1.msra.mxu0 0.0
        %503 = vmatprep.subr.mxu0 0.0
        %504 = vmatpush1.msra.mxu0 0.0
        %505 = vmatprep.subr.mxu0 0.0
        %506 = vmatpush1.msra.mxu0 0.0
        %507 = vmatprep.subr.mxu0 0.0
        %508 = vmatpush1.msra.mxu0 0.0
        %509 = vmatprep.subr.mxu0 0.0
        %510 = vmatpush1.msra.mxu0 0.0
        %511 = vmatprep.subr.mxu0 0.0
        %512 = vmatpush1.msra.mxu0 0.0
        %513 = vmatprep.subr.mxu0 0.0
        %514 = vmatpush1.msra.mxu0 0.0
        %515 = vmatprep.subr.mxu0 0.0
        %516 = vmatpush1.msra.mxu0 0.0
        %517 = vmatprep.subr.mxu0 0.0
        %518 = vmatpush1.msra.mxu0 %v489
        %519 = vmatprep.subr.mxu0 0.0
        %520 = vmatpush1.msra.mxu0 %v488
        %521 = vmatprep.subr.mxu0 0.0
        %522 = vmatpush1.msra.mxu0 %v487
        %523 = vmatprep.subr.mxu0 0.0
        %524 = vmatpush1.msra.mxu0 %v486
        %525 = vmatprep.subr.mxu0 0.0
        %526 = vmatpush2.msra.mxu0 0.0
        %527 = vmatprep.subr.mxu0 0.0
        %528 = vmatpush2.msra.mxu0 0.0
        %529 = vmatprep.subr.mxu0 0.0
        %530 = vmatpush2.msra.mxu0 0.0
        %531 = vmatprep.subr.mxu0 0.0
        %532 = vmatpush2.msra.mxu0 0.0
        %533 = vmatprep.subr.mxu0 0.0
        %534 = vmatpush2.msra.mxu0 0.0
        %535 = vmatprep.subr.mxu0 0.0
        %536 = vmatpush2.msra.mxu0 0.0
        %537 = vmatprep.subr.mxu0 0.0
        %538 = vmatpush2.msra.mxu0 0.0
        %539 = vmatprep.subr.mxu0 0.0
        %540 = vmatpush2.msra.mxu0 0.0
        %541 = vmatprep.subr.mxu0 0.0
        %542 = vmatpush2.msra.mxu0 0.0
        %543 = vmatprep.subr.mxu0 0.0
        %544 = vmatpush2.msra.mxu0 0.0
        %545 = vmatprep.subr.mxu0 0.0
        %546 = vmatpush2.msra.mxu0 0.0
        %547 = vmatprep.subr.mxu0 0.0
        %548 = vmatpush2.msra.mxu0 0.0
        %549 = vmatprep.subr.mxu0 0.0
        %550 = vmatpush2.msra.mxu0 0.0
        %551 = vmatprep.subr.mxu0 0.0
        %552 = vmatpush2.msra.mxu0 0.0
        %553 = vmatprep.subr.mxu0 0.0
        %554 = vmatpush2.msra.mxu0 0.0
        %555 = vmatprep.subr.mxu0 0.0
        %556 = vmatpush2.msra.mxu0 0.0
        %557 = vmatprep.mubr.f32.mxu0 0.0
        %558 = vmatmul.mubr.f32.gmra.mxu0 %v491
        %v559 = vpop.f32.mrf.mxu0
        %v560 = vadd.f32 0.0, %v559
        %v561 = vpop.f32.mrf.mxu0
        %562 = vdwg.mxu0
        %v563 = vld [vmem:[#allocation13] sm:$0xff]
        %v564 = vld [vmem:[#allocation13 + $0x8] sm:$0xff]
        %v565 = vld [vmem:[#allocation13 + $0x10] sm:$0xff]
        %v566 = vld [vmem:[#allocation13 + $0x18] sm:$0xff]
        %567 = vmatprep.subr.mxu0 0.0
        %568 = vmatpush1.msra.mxu0 0.0
        %569 = vmatprep.subr.mxu0 0.0
        %570 = vmatpush1.msra.mxu0 0.0
        %571 = vmatprep.subr.mxu0 0.0
        %572 = vmatpush1.msra.mxu0 0.0
        %573 = vmatprep.subr.mxu0 0.0
        %574 = vmatpush1.msra.mxu0 0.0
        %575 = vmatprep.subr.mxu0 0.0
        %576 = vmatpush1.msra.mxu0 0.0
        %577 = vmatprep.subr.mxu0 0.0
        %578 = vmatpush1.msra.mxu0 0.0
        %579 = vmatprep.subr.mxu0 0.0
        %580 = vmatpush1.msra.mxu0 0.0
        %581 = vmatprep.subr.mxu0 0.0
        %582 = vmatpush1.msra.mxu0 0.0
        %583 = vmatprep.subr.mxu0 0.0
        %584 = vmatpush1.msra.mxu0 0.0
        %585 = vmatprep.subr.mxu0 0.0
        %586 = vmatpush1.msra.mxu0 0.0
        %587 = vmatprep.subr.mxu0 0.0
        %588 = vmatpush1.msra.mxu0 0.0
        %589 = vmatprep.subr.mxu0 0.0
        %590 = vmatpush1.msra.mxu0 0.0
        %591 = vmatprep.subr.mxu0 0.0
        %592 = vmatpush1.msra.mxu0 %v566
        %593 = vmatprep.subr.mxu0 0.0
        %594 = vmatpush1.msra.mxu0 %v565
        %595 = vmatprep.subr.mxu0 0.0
        %596 = vmatpush1.msra.mxu0 %v564
        %597 = vmatprep.subr.mxu0 0.0
        %598 = vmatpush1.msra.mxu0 %v563
        %599 = vmatprep.subr.mxu0 0.0
        %600 = vmatpush2.msra.mxu0 0.0
        %601 = vmatprep.subr.mxu0 0.0
        %602 = vmatpush2.msra.mxu0 0.0
        %603 = vmatprep.subr.mxu0 0.0
        %604 = vmatpush2.msra.mxu0 0.0
        %605 = vmatprep.subr.mxu0 0.0
        %606 = vmatpush2.msra.mxu0 0.0
        %607 = vmatprep.subr.mxu0 0.0
        %608 = vmatpush2.msra.mxu0 0.0
        %609 = vmatprep.subr.mxu0 0.0
        %610 = vmatpush2.msra.mxu0 0.0
        %611 = vmatprep.subr.mxu0 0.0
        %612 = vmatpush2.msra.mxu0 0.0
        %613 = vmatprep.subr.mxu0 0.0
        %614 = vmatpush2.msra.mxu0 0.0
        %615 = vmatprep.subr.mxu0 0.0
        %616 = vmatpush2.msra.mxu0 0.0
        %617 = vmatprep.subr.mxu0 0.0
        %618 = vmatpush2.msra.mxu0 0.0
        %619 = vmatprep.subr.mxu0 0.0
        %620 = vmatpush2.msra.mxu0 0.0
        %621 = vmatprep.subr.mxu0 0.0
        %622 = vmatpush2.msra.mxu0 0.0
        %623 = vmatprep.subr.mxu0 0.0
        %624 = vmatpush2.msra.mxu0 0.0
        %625 = vmatprep.subr.mxu0 0.0
        %626 = vmatpush2.msra.mxu0 0.0
        %627 = vmatprep.subr.mxu0 0.0
        %628 = vmatpush2.msra.mxu0 0.0
        %629 = vmatprep.subr.mxu0 0.0
        %630 = vmatpush2.msra.mxu0 0.0
        %631 = vmatprep.mubr.f32.mxu0 0.0
        %632 = vmatmul.mubr.f32.gmra.mxu0 %v491
        %v633 = vpop.f32.mrf.mxu0
        %v634 = vadd.f32 0.0, %v633
        %v635 = vpop.f32.mrf.mxu0
        %636 = vdwg.mxu0
        %v637 = vmul.f32 %v483, 0.35355338
        %vm638 = vcmask 64512
        %639 = vst.msk [vmem:[#allocation2] sm:$0xff] %vm638, %v637
        %640 = vst.msk [vmem:[#allocation3] sm:$0xff] %vm638, %v560
        %641 = vst.msk [vmem:[#allocation4] sm:$0xff] %vm638, %v634
        %643 = vrot.lane.b32.xlu0 %v637, 120
        %v644 = vpop.permute.xlu0 %643
        %s646 = scalar_lea.vmem [#allocation2], 8
        %647 = vst.msk [vmem:[%s646] sm:$0xff] %vm638, %v644
        %649 = vrot.lane.b32.xlu0 %v560, 120
        %v650 = vpop.permute.xlu0 %649
        %s652 = scalar_lea.vmem [#allocation3], 8
        %653 = vst.msk [vmem:[%s652] sm:$0xff] %vm638, %v650
        %655 = vrot.lane.b32.xlu0 %v634, 120
        %v656 = vpop.permute.xlu0 %655
        %s658 = scalar_lea.vmem [#allocation4], 8
        %659 = vst.msk [vmem:[%s658] sm:$0xff] %vm638, %v656
        %660 = vrot.lane.b32.xlu0 %v637, 112
        %v661 = vpop.permute.xlu0 %660
        %s663 = scalar_lea.vmem [#allocation2], 16
        %664 = vst.msk [vmem:[%s663] sm:$0xff] %vm638, %v661
        %665 = vrot.lane.b32.xlu0 %v560, 112
        %v666 = vpop.permute.xlu0 %665
        %s668 = scalar_lea.vmem [#allocation3], 16
        %669 = vst.msk [vmem:[%s668] sm:$0xff] %vm638, %v666
        %670 = vrot.lane.b32.xlu0 %v634, 112
        %v671 = vpop.permute.xlu0 %670
        %s673 = scalar_lea.vmem [#allocation4], 16
        %674 = vst.msk [vmem:[%s673] sm:$0xff] %vm638, %v671
        %675 = vrot.lane.b32.xlu0 %v637, 104
        %v676 = vpop.permute.xlu0 %675
        %s678 = scalar_lea.vmem [#allocation2], 24
        %679 = vst.msk [vmem:[%s678] sm:$0xff] %vm638, %v676
        %680 = vrot.lane.b32.xlu0 %v560, 104
        %v681 = vpop.permute.xlu0 %680
        %s683 = scalar_lea.vmem [#allocation3], 24
        %684 = vst.msk [vmem:[%s683] sm:$0xff] %vm638, %v681
        %685 = vrot.lane.b32.xlu0 %v634, 104
        %v686 = vpop.permute.xlu0 %685
        %s688 = scalar_lea.vmem [#allocation4], 24
        %689 = vst.msk [vmem:[%s688] sm:$0xff] %vm638, %v686
        %v690 = vld [vmem:[#allocation2] sm:$0xff]
        %v691 = vld [vmem:[#allocation2 + $0x8] sm:$0xff]
        %v692 = vld [vmem:[#allocation2 + $0x10] sm:$0xff]
        %v693 = vld [vmem:[#allocation2 + $0x18] sm:$0xff]
        %v694 = vld [vmem:[#allocation3] sm:$0xff]
        %v695 = vld [vmem:[#allocation3 + $0x8] sm:$0xff]
        %v696 = vld [vmem:[#allocation3 + $0x10] sm:$0xff]
        %v697 = vld [vmem:[#allocation3 + $0x18] sm:$0xff]
        %v698 = vld [vmem:[#allocation4] sm:$0xff]
        %v699 = vld [vmem:[#allocation4 + $0x8] sm:$0xff]
        %v700 = vld [vmem:[#allocation4 + $0x10] sm:$0xff]
        %v701 = vld [vmem:[#allocation4 + $0x18] sm:$0xff]
        %v703 = vsel %vm638, %v690, 0
        %v706 = vsel %vm638, %v694, 0
        %708 = vmatprep.subr.mxu0 0.0
        %709 = vmatpush1.xpose.msra.mxu0 0.0
        %710 = vmatprep.subr.mxu0 0.0
        %711 = vmatpush1.xpose.msra.mxu0 0.0
        %712 = vmatprep.subr.mxu0 0.0
        %713 = vmatpush1.xpose.msra.mxu0 0.0
        %714 = vmatprep.subr.mxu0 0.0
        %715 = vmatpush1.xpose.msra.mxu0 0.0
        %716 = vmatprep.subr.mxu0 0.0
        %717 = vmatpush1.xpose.msra.mxu0 0.0
        %718 = vmatprep.subr.mxu0 0.0
        %719 = vmatpush1.xpose.msra.mxu0 0.0
        %720 = vmatprep.subr.mxu0 0.0
        %721 = vmatpush1.xpose.msra.mxu0 0.0
        %722 = vmatprep.subr.mxu0 0.0
        %723 = vmatpush1.xpose.msra.mxu0 0.0
        %724 = vmatprep.subr.mxu0 0.0
        %725 = vmatpush1.xpose.msra.mxu0 0.0
        %726 = vmatprep.subr.mxu0 0.0
        %727 = vmatpush1.xpose.msra.mxu0 0.0
        %728 = vmatprep.subr.mxu0 0.0
        %729 = vmatpush1.xpose.msra.mxu0 0.0
        %730 = vmatprep.subr.mxu0 0.0
        %731 = vmatpush1.xpose.msra.mxu0 0.0
        %732 = vmatprep.subr.mxu0 0.0
        %733 = vmatpush1.xpose.msra.mxu0 0.0
        %734 = vmatprep.subr.mxu0 0.0
        %735 = vmatpush1.xpose.msra.mxu0 0.0
        %736 = vmatprep.subr.mxu0 0.0
        %737 = vmatpush1.xpose.msra.mxu0 0.0
        %738 = vmatprep.subr.mxu0 0.0
        %739 = vmatpush1.xpose.msra.mxu0 %v706
        %740 = vmatprep.subr.mxu0 0.0
        %741 = vmatpush2.xpose.msra.mxu0 0.0
        %742 = vmatprep.subr.mxu0 0.0
        %743 = vmatpush2.xpose.msra.mxu0 0.0
        %744 = vmatprep.subr.mxu0 0.0
        %745 = vmatpush2.xpose.msra.mxu0 0.0
        %746 = vmatprep.subr.mxu0 0.0
        %747 = vmatpush2.xpose.msra.mxu0 0.0
        %748 = vmatprep.subr.mxu0 0.0
        %749 = vmatpush2.xpose.msra.mxu0 0.0
        %750 = vmatprep.subr.mxu0 0.0
        %751 = vmatpush2.xpose.msra.mxu0 0.0
        %752 = vmatprep.subr.mxu0 0.0
        %753 = vmatpush2.xpose.msra.mxu0 0.0
        %754 = vmatprep.subr.mxu0 0.0
        %755 = vmatpush2.xpose.msra.mxu0 0.0
        %756 = vmatprep.subr.mxu0 0.0
        %757 = vmatpush2.xpose.msra.mxu0 0.0
        %758 = vmatprep.subr.mxu0 0.0
        %759 = vmatpush2.xpose.msra.mxu0 0.0
        %760 = vmatprep.subr.mxu0 0.0
        %761 = vmatpush2.xpose.msra.mxu0 0.0
        %762 = vmatprep.subr.mxu0 0.0
        %763 = vmatpush2.xpose.msra.mxu0 0.0
        %764 = vmatprep.subr.mxu0 0.0
        %765 = vmatpush2.xpose.msra.mxu0 0.0
        %766 = vmatprep.subr.mxu0 0.0
        %767 = vmatpush2.xpose.msra.mxu0 0.0
        %768 = vmatprep.subr.mxu0 0.0
        %769 = vmatpush2.xpose.msra.mxu0 0.0
        %770 = vmatprep.subr.mxu0 0.0
        %771 = vmatpush2.xpose.msra.mxu0 0.0
        %772 = vmatprep.mubr.f32.mxu0 0.0
        %773 = vmatmul.mubr.f32.gmra.mxu0 %v703
        %v774 = vpop.f32.mrf.mxu0
        %v775 = vadd.f32 0.0, %v774
        %v776 = vpop.f32.mrf.mxu0
        %777 = vdwg.mxu0
        %v779 = vsel %vm638, %v691, 0
        %v782 = vsel %vm638, %v695, 0
        %784 = vmatprep.subr.mxu0 0.0
        %785 = vmatpush1.xpose.msra.mxu0 0.0
        %786 = vmatprep.subr.mxu0 0.0
        %787 = vmatpush1.xpose.msra.mxu0 0.0
        %788 = vmatprep.subr.mxu0 0.0
        %789 = vmatpush1.xpose.msra.mxu0 0.0
        %790 = vmatprep.subr.mxu0 0.0
        %791 = vmatpush1.xpose.msra.mxu0 0.0
        %792 = vmatprep.subr.mxu0 0.0
        %793 = vmatpush1.xpose.msra.mxu0 0.0
        %794 = vmatprep.subr.mxu0 0.0
        %795 = vmatpush1.xpose.msra.mxu0 0.0
        %796 = vmatprep.subr.mxu0 0.0
        %797 = vmatpush1.xpose.msra.mxu0 0.0
        %798 = vmatprep.subr.mxu0 0.0
        %799 = vmatpush1.xpose.msra.mxu0 0.0
        %800 = vmatprep.subr.mxu0 0.0
        %801 = vmatpush1.xpose.msra.mxu0 0.0
        %802 = vmatprep.subr.mxu0 0.0
        %803 = vmatpush1.xpose.msra.mxu0 0.0
        %804 = vmatprep.subr.mxu0 0.0
        %805 = vmatpush1.xpose.msra.mxu0 0.0
        %806 = vmatprep.subr.mxu0 0.0
        %807 = vmatpush1.xpose.msra.mxu0 0.0
        %808 = vmatprep.subr.mxu0 0.0
        %809 = vmatpush1.xpose.msra.mxu0 0.0
        %810 = vmatprep.subr.mxu0 0.0
        %811 = vmatpush1.xpose.msra.mxu0 0.0
        %812 = vmatprep.subr.mxu0 0.0
        %813 = vmatpush1.xpose.msra.mxu0 0.0
        %814 = vmatprep.subr.mxu0 0.0
        %815 = vmatpush1.xpose.msra.mxu0 %v782
        %816 = vmatprep.subr.mxu0 0.0
        %817 = vmatpush2.xpose.msra.mxu0 0.0
        %818 = vmatprep.subr.mxu0 0.0
        %819 = vmatpush2.xpose.msra.mxu0 0.0
        %820 = vmatprep.subr.mxu0 0.0
        %821 = vmatpush2.xpose.msra.mxu0 0.0
        %822 = vmatprep.subr.mxu0 0.0
        %823 = vmatpush2.xpose.msra.mxu0 0.0
        %824 = vmatprep.subr.mxu0 0.0
        %825 = vmatpush2.xpose.msra.mxu0 0.0
        %826 = vmatprep.subr.mxu0 0.0
        %827 = vmatpush2.xpose.msra.mxu0 0.0
        %828 = vmatprep.subr.mxu0 0.0
        %829 = vmatpush2.xpose.msra.mxu0 0.0
        %830 = vmatprep.subr.mxu0 0.0
        %831 = vmatpush2.xpose.msra.mxu0 0.0
        %832 = vmatprep.subr.mxu0 0.0
        %833 = vmatpush2.xpose.msra.mxu0 0.0
        %834 = vmatprep.subr.mxu0 0.0
        %835 = vmatpush2.xpose.msra.mxu0 0.0
        %836 = vmatprep.subr.mxu0 0.0
        %837 = vmatpush2.xpose.msra.mxu0 0.0
        %838 = vmatprep.subr.mxu0 0.0
        %839 = vmatpush2.xpose.msra.mxu0 0.0
        %840 = vmatprep.subr.mxu0 0.0
        %841 = vmatpush2.xpose.msra.mxu0 0.0
        %842 = vmatprep.subr.mxu0 0.0
        %843 = vmatpush2.xpose.msra.mxu0 0.0
        %844 = vmatprep.subr.mxu0 0.0
        %845 = vmatpush2.xpose.msra.mxu0 0.0
        %846 = vmatprep.subr.mxu0 0.0
        %847 = vmatpush2.xpose.msra.mxu0 0.0
        %848 = vmatprep.mubr.f32.mxu0 0.0
        %849 = vmatmul.mubr.f32.gmra.mxu0 %v779
        %v850 = vpop.f32.mrf.mxu0
        %v851 = vadd.f32 0.0, %v850
        %v852 = vpop.f32.mrf.mxu0
        %853 = vdwg.mxu0
        %v855 = vsel %vm638, %v692, 0
        %v858 = vsel %vm638, %v696, 0
        %860 = vmatprep.subr.mxu0 0.0
        %861 = vmatpush1.xpose.msra.mxu0 0.0
        %862 = vmatprep.subr.mxu0 0.0
        %863 = vmatpush1.xpose.msra.mxu0 0.0
        %864 = vmatprep.subr.mxu0 0.0
        %865 = vmatpush1.xpose.msra.mxu0 0.0
        %866 = vmatprep.subr.mxu0 0.0
        %867 = vmatpush1.xpose.msra.mxu0 0.0
        %868 = vmatprep.subr.mxu0 0.0
        %869 = vmatpush1.xpose.msra.mxu0 0.0
        %870 = vmatprep.subr.mxu0 0.0
        %871 = vmatpush1.xpose.msra.mxu0 0.0
        %872 = vmatprep.subr.mxu0 0.0
        %873 = vmatpush1.xpose.msra.mxu0 0.0
        %874 = vmatprep.subr.mxu0 0.0
        %875 = vmatpush1.xpose.msra.mxu0 0.0
        %876 = vmatprep.subr.mxu0 0.0
        %877 = vmatpush1.xpose.msra.mxu0 0.0
        %878 = vmatprep.subr.mxu0 0.0
        %879 = vmatpush1.xpose.msra.mxu0 0.0
        %880 = vmatprep.subr.mxu0 0.0
        %881 = vmatpush1.xpose.msra.mxu0 0.0
        %882 = vmatprep.subr.mxu0 0.0
        %883 = vmatpush1.xpose.msra.mxu0 0.0
        %884 = vmatprep.subr.mxu0 0.0
        %885 = vmatpush1.xpose.msra.mxu0 0.0
        %886 = vmatprep.subr.mxu0 0.0
        %887 = vmatpush1.xpose.msra.mxu0 0.0
        %888 = vmatprep.subr.mxu0 0.0
        %889 = vmatpush1.xpose.msra.mxu0 0.0
        %890 = vmatprep.subr.mxu0 0.0
        %891 = vmatpush1.xpose.msra.mxu0 %v858
        %892 = vmatprep.subr.mxu0 0.0
        %893 = vmatpush2.xpose.msra.mxu0 0.0
        %894 = vmatprep.subr.mxu0 0.0
        %895 = vmatpush2.xpose.msra.mxu0 0.0
        %896 = vmatprep.subr.mxu0 0.0
        %897 = vmatpush2.xpose.msra.mxu0 0.0
        %898 = vmatprep.subr.mxu0 0.0
        %899 = vmatpush2.xpose.msra.mxu0 0.0
        %900 = vmatprep.subr.mxu0 0.0
        %901 = vmatpush2.xpose.msra.mxu0 0.0
        %902 = vmatprep.subr.mxu0 0.0
        %903 = vmatpush2.xpose.msra.mxu0 0.0
        %904 = vmatprep.subr.mxu0 0.0
        %905 = vmatpush2.xpose.msra.mxu0 0.0
        %906 = vmatprep.subr.mxu0 0.0
        %907 = vmatpush2.xpose.msra.mxu0 0.0
        %908 = vmatprep.subr.mxu0 0.0
        %909 = vmatpush2.xpose.msra.mxu0 0.0
        %910 = vmatprep.subr.mxu0 0.0
        %911 = vmatpush2.xpose.msra.mxu0 0.0
        %912 = vmatprep.subr.mxu0 0.0
        %913 = vmatpush2.xpose.msra.mxu0 0.0
        %914 = vmatprep.subr.mxu0 0.0
        %915 = vmatpush2.xpose.msra.mxu0 0.0
        %916 = vmatprep.subr.mxu0 0.0
        %917 = vmatpush2.xpose.msra.mxu0 0.0
        %918 = vmatprep.subr.mxu0 0.0
        %919 = vmatpush2.xpose.msra.mxu0 0.0
        %920 = vmatprep.subr.mxu0 0.0
        %921 = vmatpush2.xpose.msra.mxu0 0.0
        %922 = vmatprep.subr.mxu0 0.0
        %923 = vmatpush2.xpose.msra.mxu0 0.0
        %924 = vmatprep.mubr.f32.mxu0 0.0
        %925 = vmatmul.mubr.f32.gmra.mxu0 %v855
        %v926 = vpop.f32.mrf.mxu0
        %v927 = vadd.f32 0.0, %v926
        %v928 = vpop.f32.mrf.mxu0
        %929 = vdwg.mxu0
        %v931 = vsel %vm638, %v693, 0
        %v934 = vsel %vm638, %v697, 0
        %936 = vmatprep.subr.mxu0 0.0
        %937 = vmatpush1.xpose.msra.mxu0 0.0
        %938 = vmatprep.subr.mxu0 0.0
        %939 = vmatpush1.xpose.msra.mxu0 0.0
        %940 = vmatprep.subr.mxu0 0.0
        %941 = vmatpush1.xpose.msra.mxu0 0.0
        %942 = vmatprep.subr.mxu0 0.0
        %943 = vmatpush1.xpose.msra.mxu0 0.0
        %944 = vmatprep.subr.mxu0 0.0
        %945 = vmatpush1.xpose.msra.mxu0 0.0
        %946 = vmatprep.subr.mxu0 0.0
        %947 = vmatpush1.xpose.msra.mxu0 0.0
        %948 = vmatprep.subr.mxu0 0.0
        %949 = vmatpush1.xpose.msra.mxu0 0.0
        %950 = vmatprep.subr.mxu0 0.0
        %951 = vmatpush1.xpose.msra.mxu0 0.0
        %952 = vmatprep.subr.mxu0 0.0
        %953 = vmatpush1.xpose.msra.mxu0 0.0
        %954 = vmatprep.subr.mxu0 0.0
        %955 = vmatpush1.xpose.msra.mxu0 0.0
        %956 = vmatprep.subr.mxu0 0.0
        %957 = vmatpush1.xpose.msra.mxu0 0.0
        %958 = vmatprep.subr.mxu0 0.0
        %959 = vmatpush1.xpose.msra.mxu0 0.0
        %960 = vmatprep.subr.mxu0 0.0
        %961 = vmatpush1.xpose.msra.mxu0 0.0
        %962 = vmatprep.subr.mxu0 0.0
        %963 = vmatpush1.xpose.msra.mxu0 0.0
        %964 = vmatprep.subr.mxu0 0.0
        %965 = vmatpush1.xpose.msra.mxu0 0.0
        %966 = vmatprep.subr.mxu0 0.0
        %967 = vmatpush1.xpose.msra.mxu0 %v934
        %968 = vmatprep.subr.mxu0 0.0
        %969 = vmatpush2.xpose.msra.mxu0 0.0
        %970 = vmatprep.subr.mxu0 0.0
        %971 = vmatpush2.xpose.msra.mxu0 0.0
        %972 = vmatprep.subr.mxu0 0.0
        %973 = vmatpush2.xpose.msra.mxu0 0.0
        %974 = vmatprep.subr.mxu0 0.0
        %975 = vmatpush2.xpose.msra.mxu0 0.0
        %976 = vmatprep.subr.mxu0 0.0
        %977 = vmatpush2.xpose.msra.mxu0 0.0
        %978 = vmatprep.subr.mxu0 0.0
        %979 = vmatpush2.xpose.msra.mxu0 0.0
        %980 = vmatprep.subr.mxu0 0.0
        %981 = vmatpush2.xpose.msra.mxu0 0.0
        %982 = vmatprep.subr.mxu0 0.0
        %983 = vmatpush2.xpose.msra.mxu0 0.0
        %984 = vmatprep.subr.mxu0 0.0
        %985 = vmatpush2.xpose.msra.mxu0 0.0
        %986 = vmatprep.subr.mxu0 0.0
        %987 = vmatpush2.xpose.msra.mxu0 0.0
        %988 = vmatprep.subr.mxu0 0.0
        %989 = vmatpush2.xpose.msra.mxu0 0.0
        %990 = vmatprep.subr.mxu0 0.0
        %991 = vmatpush2.xpose.msra.mxu0 0.0
        %992 = vmatprep.subr.mxu0 0.0
        %993 = vmatpush2.xpose.msra.mxu0 0.0
        %994 = vmatprep.subr.mxu0 0.0
        %995 = vmatpush2.xpose.msra.mxu0 0.0
        %996 = vmatprep.subr.mxu0 0.0
        %997 = vmatpush2.xpose.msra.mxu0 0.0
        %998 = vmatprep.subr.mxu0 0.0
        %999 = vmatpush2.xpose.msra.mxu0 0.0
        %1000 = vmatprep.mubr.f32.mxu0 0.0
        %1001 = vmatmul.mubr.f32.gmra.mxu0 %v931
        %v1002 = vpop.f32.mrf.mxu0
        %v1003 = vadd.f32 0.0, %v1002
        %v1004 = vpop.f32.mrf.mxu0
        %1005 = vdwg.mxu0
        %v1006 = vsel %vm638, %v775, -inf
        %1007 = vmax.xlane.f32.xlu0 %v1006
        %v1008 = vpop.xlane.xlu0 %1007
        %v1009 = vsel %vm638, %v851, -inf
        %1010 = vmax.xlane.f32.xlu0 %v1009
        %v1011 = vpop.xlane.xlu0 %1010
        %v1012 = vsel %vm638, %v927, -inf
        %1013 = vmax.xlane.f32.xlu0 %v1012
        %v1014 = vpop.xlane.xlu0 %1013
        %v1015 = vsel %vm638, %v1003, -inf
        %1016 = vmax.xlane.f32.xlu0 %v1015
        %v1017 = vpop.xlane.xlu0 %1016
        %v1018 = vsub.f32 %v775, %v1008
        %v1019 = vsub.f32 %v851, %v1011
        %v1020 = vsub.f32 %v927, %v1014
        %v1021 = vsub.f32 %v1003, %v1017
        %v1022 = vmul.f32 %v1018, 1.442695
        %v1023 = vpow.pop %v1022
        %v1024 = vmul.f32 %v1019, 1.442695
        %v1025 = vpow.pop %v1024
        %v1026 = vmul.f32 %v1020, 1.442695
        %v1027 = vpow.pop %v1026
        %v1028 = vmul.f32 %v1021, 1.442695
        %v1029 = vpow.pop %v1028
        %v1030 = vsel %vm638, %v1023, 0.0
        %1031 = vadd.xlane.f32.xlu0 %v1030
        %v1032 = vpop.xlane.xlu0 %1031
        %v1033 = vsel %vm638, %v1025, 0.0
        %1034 = vadd.xlane.f32.xlu0 %v1033
        %v1035 = vpop.xlane.xlu0 %1034
        %v1036 = vsel %vm638, %v1027, 0.0
        %1037 = vadd.xlane.f32.xlu0 %v1036
        %v1038 = vpop.xlane.xlu0 %1037
        %v1039 = vsel %vm638, %v1029, 0.0
        %1040 = vadd.xlane.f32.xlu0 %v1039
        %v1041 = vpop.xlane.xlu0 %1040
        %v1042 = vrcp.pop %v1032
        %v1043 = vrcp.pop %v1035
        %v1044 = vrcp.pop %v1038
        %v1045 = vrcp.pop %v1041
        %v1046 = vmul.f32 %v1023, %v1042
        %v1047 = vmul.f32 %v1025, %v1043
        %v1048 = vmul.f32 %v1027, %v1044
        %v1049 = vmul.f32 %v1029, %v1045
        %v1051 = vsel %vm638, %v1046, 0
        %1053 = vmatprep.subr.mxu0 0.0
        %1054 = vmatpush1.msra.mxu0 0.0
        %1055 = vmatprep.subr.mxu0 0.0
        %1056 = vmatpush1.msra.mxu0 0.0
        %1057 = vmatprep.subr.mxu0 0.0
        %1058 = vmatpush1.msra.mxu0 0.0
        %1059 = vmatprep.subr.mxu0 0.0
        %1060 = vmatpush1.msra.mxu0 0.0
        %1061 = vmatprep.subr.mxu0 0.0
        %1062 = vmatpush1.msra.mxu0 0.0
        %1063 = vmatprep.subr.mxu0 0.0
        %1064 = vmatpush1.msra.mxu0 0.0
        %1065 = vmatprep.subr.mxu0 0.0
        %1066 = vmatpush1.msra.mxu0 0.0
        %1067 = vmatprep.subr.mxu0 0.0
        %1068 = vmatpush1.msra.mxu0 0.0
        %1069 = vmatprep.subr.mxu0 0.0
        %1070 = vmatpush1.msra.mxu0 0.0
        %1071 = vmatprep.subr.mxu0 0.0
        %1072 = vmatpush1.msra.mxu0 0.0
        %1073 = vmatprep.subr.mxu0 0.0
        %1074 = vmatpush1.msra.mxu0 0.0
        %1075 = vmatprep.subr.mxu0 0.0
        %1076 = vmatpush1.msra.mxu0 0.0
        %1077 = vmatprep.subr.mxu0 0.0
        %1078 = vmatpush1.msra.mxu0 0.0
        %1079 = vmatprep.subr.mxu0 0.0
        %1080 = vmatpush1.msra.mxu0 0.0
        %1081 = vmatprep.subr.mxu0 0.0
        %1082 = vmatpush1.msra.mxu0 0.0
        %1083 = vmatprep.subr.mxu0 0.0
        %1084 = vmatpush1.msra.mxu0 %v698
        %1085 = vmatprep.subr.mxu0 0.0
        %1086 = vmatpush2.msra.mxu0 0.0
        %1087 = vmatprep.subr.mxu0 0.0
        %1088 = vmatpush2.msra.mxu0 0.0
        %1089 = vmatprep.subr.mxu0 0.0
        %1090 = vmatpush2.msra.mxu0 0.0
        %1091 = vmatprep.subr.mxu0 0.0
        %1092 = vmatpush2.msra.mxu0 0.0
        %1093 = vmatprep.subr.mxu0 0.0
        %1094 = vmatpush2.msra.mxu0 0.0
        %1095 = vmatprep.subr.mxu0 0.0
        %1096 = vmatpush2.msra.mxu0 0.0
        %1097 = vmatprep.subr.mxu0 0.0
        %1098 = vmatpush2.msra.mxu0 0.0
        %1099 = vmatprep.subr.mxu0 0.0
        %1100 = vmatpush2.msra.mxu0 0.0
        %1101 = vmatprep.subr.mxu0 0.0
        %1102 = vmatpush2.msra.mxu0 0.0
        %1103 = vmatprep.subr.mxu0 0.0
        %1104 = vmatpush2.msra.mxu0 0.0
        %1105 = vmatprep.subr.mxu0 0.0
        %1106 = vmatpush2.msra.mxu0 0.0
        %1107 = vmatprep.subr.mxu0 0.0
        %1108 = vmatpush2.msra.mxu0 0.0
        %1109 = vmatprep.subr.mxu0 0.0
        %1110 = vmatpush2.msra.mxu0 0.0
        %1111 = vmatprep.subr.mxu0 0.0
        %1112 = vmatpush2.msra.mxu0 0.0
        %1113 = vmatprep.subr.mxu0 0.0
        %1114 = vmatpush2.msra.mxu0 0.0
        %1115 = vmatprep.subr.mxu0 0.0
        %1116 = vmatpush2.msra.mxu0 0.0
        %1117 = vmatprep.mubr.f32.mxu0 0.0
        %1118 = vmatmul.mubr.f32.gmra.mxu0 %v1051
        %v1119 = vpop.f32.mrf.mxu0
        %v1120 = vadd.f32 0.0, %v1119
        %v1121 = vpop.f32.mrf.mxu0
        %1122 = vdwg.mxu0
        %v1124 = vsel %vm638, %v1047, 0
        %1126 = vmatprep.subr.mxu0 0.0
        %1127 = vmatpush1.msra.mxu0 0.0
        %1128 = vmatprep.subr.mxu0 0.0
        %1129 = vmatpush1.msra.mxu0 0.0
        %1130 = vmatprep.subr.mxu0 0.0
        %1131 = vmatpush1.msra.mxu0 0.0
        %1132 = vmatprep.subr.mxu0 0.0
        %1133 = vmatpush1.msra.mxu0 0.0
        %1134 = vmatprep.subr.mxu0 0.0
        %1135 = vmatpush1.msra.mxu0 0.0
        %1136 = vmatprep.subr.mxu0 0.0
        %1137 = vmatpush1.msra.mxu0 0.0
        %1138 = vmatprep.subr.mxu0 0.0
        %1139 = vmatpush1.msra.mxu0 0.0
        %1140 = vmatprep.subr.mxu0 0.0
        %1141 = vmatpush1.msra.mxu0 0.0
        %1142 = vmatprep.subr.mxu0 0.0
        %1143 = vmatpush1.msra.mxu0 0.0
        %1144 = vmatprep.subr.mxu0 0.0
        %1145 = vmatpush1.msra.mxu0 0.0
        %1146 = vmatprep.subr.mxu0 0.0
        %1147 = vmatpush1.msra.mxu0 0.0
        %1148 = vmatprep.subr.mxu0 0.0
        %1149 = vmatpush1.msra.mxu0 0.0
        %1150 = vmatprep.subr.mxu0 0.0
        %1151 = vmatpush1.msra.mxu0 0.0
        %1152 = vmatprep.subr.mxu0 0.0
        %1153 = vmatpush1.msra.mxu0 0.0
        %1154 = vmatprep.subr.mxu0 0.0
        %1155 = vmatpush1.msra.mxu0 0.0
        %1156 = vmatprep.subr.mxu0 0.0
        %1157 = vmatpush1.msra.mxu0 %v699
        %1158 = vmatprep.subr.mxu0 0.0
        %1159 = vmatpush2.msra.mxu0 0.0
        %1160 = vmatprep.subr.mxu0 0.0
        %1161 = vmatpush2.msra.mxu0 0.0
        %1162 = vmatprep.subr.mxu0 0.0
        %1163 = vmatpush2.msra.mxu0 0.0
        %1164 = vmatprep.subr.mxu0 0.0
        %1165 = vmatpush2.msra.mxu0 0.0
        %1166 = vmatprep.subr.mxu0 0.0
        %1167 = vmatpush2.msra.mxu0 0.0
        %1168 = vmatprep.subr.mxu0 0.0
        %1169 = vmatpush2.msra.mxu0 0.0
        %1170 = vmatprep.subr.mxu0 0.0
        %1171 = vmatpush2.msra.mxu0 0.0
        %1172 = vmatprep.subr.mxu0 0.0
        %1173 = vmatpush2.msra.mxu0 0.0
        %1174 = vmatprep.subr.mxu0 0.0
        %1175 = vmatpush2.msra.mxu0 0.0
        %1176 = vmatprep.subr.mxu0 0.0
        %1177 = vmatpush2.msra.mxu0 0.0
        %1178 = vmatprep.subr.mxu0 0.0
        %1179 = vmatpush2.msra.mxu0 0.0
        %1180 = vmatprep.subr.mxu0 0.0
        %1181 = vmatpush2.msra.mxu0 0.0
        %1182 = vmatprep.subr.mxu0 0.0
        %1183 = vmatpush2.msra.mxu0 0.0
        %1184 = vmatprep.subr.mxu0 0.0
        %1185 = vmatpush2.msra.mxu0 0.0
        %1186 = vmatprep.subr.mxu0 0.0
        %1187 = vmatpush2.msra.mxu0 0.0
        %1188 = vmatprep.subr.mxu0 0.0
        %1189 = vmatpush2.msra.mxu0 0.0
        %1190 = vmatprep.mubr.f32.mxu0 0.0
        %1191 = vmatmul.mubr.f32.gmra.mxu0 %v1124
        %v1192 = vpop.f32.mrf.mxu0
        %v1193 = vadd.f32 0.0, %v1192
        %v1194 = vpop.f32.mrf.mxu0
        %1195 = vdwg.mxu0
        %v1197 = vsel %vm638, %v1048, 0
        %1199 = vmatprep.subr.mxu0 0.0
        %1200 = vmatpush1.msra.mxu0 0.0
        %1201 = vmatprep.subr.mxu0 0.0
        %1202 = vmatpush1.msra.mxu0 0.0
        %1203 = vmatprep.subr.mxu0 0.0
        %1204 = vmatpush1.msra.mxu0 0.0
        %1205 = vmatprep.subr.mxu0 0.0
        %1206 = vmatpush1.msra.mxu0 0.0
        %1207 = vmatprep.subr.mxu0 0.0
        %1208 = vmatpush1.msra.mxu0 0.0
        %1209 = vmatprep.subr.mxu0 0.0
        %1210 = vmatpush1.msra.mxu0 0.0
        %1211 = vmatprep.subr.mxu0 0.0
        %1212 = vmatpush1.msra.mxu0 0.0
        %1213 = vmatprep.subr.mxu0 0.0
        %1214 = vmatpush1.msra.mxu0 0.0
        %1215 = vmatprep.subr.mxu0 0.0
        %1216 = vmatpush1.msra.mxu0 0.0
        %1217 = vmatprep.subr.mxu0 0.0
        %1218 = vmatpush1.msra.mxu0 0.0
        %1219 = vmatprep.subr.mxu0 0.0
        %1220 = vmatpush1.msra.mxu0 0.0
        %1221 = vmatprep.subr.mxu0 0.0
        %1222 = vmatpush1.msra.mxu0 0.0
        %1223 = vmatprep.subr.mxu0 0.0
        %1224 = vmatpush1.msra.mxu0 0.0
        %1225 = vmatprep.subr.mxu0 0.0
        %1226 = vmatpush1.msra.mxu0 0.0
        %1227 = vmatprep.subr.mxu0 0.0
        %1228 = vmatpush1.msra.mxu0 0.0
        %1229 = vmatprep.subr.mxu0 0.0
        %1230 = vmatpush1.msra.mxu0 %v700
        %1231 = vmatprep.subr.mxu0 0.0
        %1232 = vmatpush2.msra.mxu0 0.0
        %1233 = vmatprep.subr.mxu0 0.0
        %1234 = vmatpush2.msra.mxu0 0.0
        %1235 = vmatprep.subr.mxu0 0.0
        %1236 = vmatpush2.msra.mxu0 0.0
        %1237 = vmatprep.subr.mxu0 0.0
        %1238 = vmatpush2.msra.mxu0 0.0
        %1239 = vmatprep.subr.mxu0 0.0
        %1240 = vmatpush2.msra.mxu0 0.0
        %1241 = vmatprep.subr.mxu0 0.0
        %1242 = vmatpush2.msra.mxu0 0.0
        %1243 = vmatprep.subr.mxu0 0.0
        %1244 = vmatpush2.msra.mxu0 0.0
        %1245 = vmatprep.subr.mxu0 0.0
        %1246 = vmatpush2.msra.mxu0 0.0
        %1247 = vmatprep.subr.mxu0 0.0
        %1248 = vmatpush2.msra.mxu0 0.0
        %1249 = vmatprep.subr.mxu0 0.0
        %1250 = vmatpush2.msra.mxu0 0.0
        %1251 = vmatprep.subr.mxu0 0.0
        %1252 = vmatpush2.msra.mxu0 0.0
        %1253 = vmatprep.subr.mxu0 0.0
        %1254 = vmatpush2.msra.mxu0 0.0
        %1255 = vmatprep.subr.mxu0 0.0
        %1256 = vmatpush2.msra.mxu0 0.0
        %1257 = vmatprep.subr.mxu0 0.0
        %1258 = vmatpush2.msra.mxu0 0.0
        %1259 = vmatprep.subr.mxu0 0.0
        %1260 = vmatpush2.msra.mxu0 0.0
        %1261 = vmatprep.subr.mxu0 0.0
        %1262 = vmatpush2.msra.mxu0 0.0
        %1263 = vmatprep.mubr.f32.mxu0 0.0
        %1264 = vmatmul.mubr.f32.gmra.mxu0 %v1197
        %v1265 = vpop.f32.mrf.mxu0
        %v1266 = vadd.f32 0.0, %v1265
        %v1267 = vpop.f32.mrf.mxu0
        %1268 = vdwg.mxu0
        %v1270 = vsel %vm638, %v1049, 0
        %1272 = vmatprep.subr.mxu0 0.0
        %1273 = vmatpush1.msra.mxu0 0.0
        %1274 = vmatprep.subr.mxu0 0.0
        %1275 = vmatpush1.msra.mxu0 0.0
        %1276 = vmatprep.subr.mxu0 0.0
        %1277 = vmatpush1.msra.mxu0 0.0
        %1278 = vmatprep.subr.mxu0 0.0
        %1279 = vmatpush1.msra.mxu0 0.0
        %1280 = vmatprep.subr.mxu0 0.0
        %1281 = vmatpush1.msra.mxu0 0.0
        %1282 = vmatprep.subr.mxu0 0.0
        %1283 = vmatpush1.msra.mxu0 0.0
        %1284 = vmatprep.subr.mxu0 0.0
        %1285 = vmatpush1.msra.mxu0 0.0
        %1286 = vmatprep.subr.mxu0 0.0
        %1287 = vmatpush1.msra.mxu0 0.0
        %1288 = vmatprep.subr.mxu0 0.0
        %1289 = vmatpush1.msra.mxu0 0.0
        %1290 = vmatprep.subr.mxu0 0.0
        %1291 = vmatpush1.msra.mxu0 0.0
        %1292 = vmatprep.subr.mxu0 0.0
        %1293 = vmatpush1.msra.mxu0 0.0
        %1294 = vmatprep.subr.mxu0 0.0
        %1295 = vmatpush1.msra.mxu0 0.0
        %1296 = vmatprep.subr.mxu0 0.0
        %1297 = vmatpush1.msra.mxu0 0.0
        %1298 = vmatprep.subr.mxu0 0.0
        %1299 = vmatpush1.msra.mxu0 0.0
        %1300 = vmatprep.subr.mxu0 0.0
        %1301 = vmatpush1.msra.mxu0 0.0
        %1302 = vmatprep.subr.mxu0 0.0
        %1303 = vmatpush1.msra.mxu0 %v701
        %1304 = vmatprep.subr.mxu0 0.0
        %1305 = vmatpush2.msra.mxu0 0.0
        %1306 = vmatprep.subr.mxu0 0.0
        %1307 = vmatpush2.msra.mxu0 0.0
        %1308 = vmatprep.subr.mxu0 0.0
        %1309 = vmatpush2.msra.mxu0 0.0
        %1310 = vmatprep.subr.mxu0 0.0
        %1311 = vmatpush2.msra.mxu0 0.0
        %1312 = vmatprep.subr.mxu0 0.0
        %1313 = vmatpush2.msra.mxu0 0.0
        %1314 = vmatprep.subr.mxu0 0.0
        %1315 = vmatpush2.msra.mxu0 0.0
        %1316 = vmatprep.subr.mxu0 0.0
        %1317 = vmatpush2.msra.mxu0 0.0
        %1318 = vmatprep.subr.mxu0 0.0
        %1319 = vmatpush2.msra.mxu0 0.0
        %1320 = vmatprep.subr.mxu0 0.0
        %1321 = vmatpush2.msra.mxu0 0.0
        %1322 = vmatprep.subr.mxu0 0.0
        %1323 = vmatpush2.msra.mxu0 0.0
        %1324 = vmatprep.subr.mxu0 0.0
        %1325 = vmatpush2.msra.mxu0 0.0
        %1326 = vmatprep.subr.mxu0 0.0
        %1327 = vmatpush2.msra.mxu0 0.0
        %1328 = vmatprep.subr.mxu0 0.0
        %1329 = vmatpush2.msra.mxu0 0.0
        %1330 = vmatprep.subr.mxu0 0.0
        %1331 = vmatpush2.msra.mxu0 0.0
        %1332 = vmatprep.subr.mxu0 0.0
        %1333 = vmatpush2.msra.mxu0 0.0
        %1334 = vmatprep.subr.mxu0 0.0
        %1335 = vmatpush2.msra.mxu0 0.0
        %1336 = vmatprep.mubr.f32.mxu0 0.0
        %1337 = vmatmul.mubr.f32.gmra.mxu0 %v1270
        %v1338 = vpop.f32.mrf.mxu0
        %v1339 = vadd.f32 0.0, %v1338
        %v1340 = vpop.f32.mrf.mxu0
        %1341 = vdwg.mxu0
        %v1342 = vld [vmem:[#allocation14] sm:$0xff]
        %v1343 = vld [vmem:[#allocation14 + $0x8] sm:$0xff]
        %v1344 = vld [vmem:[#allocation14 + $0x10] sm:$0xff]
        %v1345 = vld [vmem:[#allocation14 + $0x18] sm:$0xff]
        %v1347 = vsel %vm638, %v1120, 0
        %1349 = vmatprep.subr.mxu0 0.0
        %1350 = vmatpush1.msra.mxu0 0.0
        %1351 = vmatprep.subr.mxu0 0.0
        %1352 = vmatpush1.msra.mxu0 0.0
        %1353 = vmatprep.subr.mxu0 0.0
        %1354 = vmatpush1.msra.mxu0 0.0
        %1355 = vmatprep.subr.mxu0 0.0
        %1356 = vmatpush1.msra.mxu0 0.0
        %1357 = vmatprep.subr.mxu0 0.0
        %1358 = vmatpush1.msra.mxu0 0.0
        %1359 = vmatprep.subr.mxu0 0.0
        %1360 = vmatpush1.msra.mxu0 0.0
        %1361 = vmatprep.subr.mxu0 0.0
        %1362 = vmatpush1.msra.mxu0 0.0
        %1363 = vmatprep.subr.mxu0 0.0
        %1364 = vmatpush1.msra.mxu0 0.0
        %1365 = vmatprep.subr.mxu0 0.0
        %1366 = vmatpush1.msra.mxu0 0.0
        %1367 = vmatprep.subr.mxu0 0.0
        %1368 = vmatpush1.msra.mxu0 0.0
        %1369 = vmatprep.subr.mxu0 0.0
        %1370 = vmatpush1.msra.mxu0 0.0
        %1371 = vmatprep.subr.mxu0 0.0
        %1372 = vmatpush1.msra.mxu0 0.0
        %1373 = vmatprep.subr.mxu0 0.0
        %1374 = vmatpush1.msra.mxu0 0.0
        %1375 = vmatprep.subr.mxu0 0.0
        %1376 = vmatpush1.msra.mxu0 0.0
        %1377 = vmatprep.subr.mxu0 0.0
        %1378 = vmatpush1.msra.mxu0 0.0
        %1379 = vmatprep.subr.mxu0 0.0
        %1380 = vmatpush1.msra.mxu0 %v1342
        %1381 = vmatprep.subr.mxu0 0.0
        %1382 = vmatpush2.msra.mxu0 0.0
        %1383 = vmatprep.subr.mxu0 0.0
        %1384 = vmatpush2.msra.mxu0 0.0
        %1385 = vmatprep.subr.mxu0 0.0
        %1386 = vmatpush2.msra.mxu0 0.0
        %1387 = vmatprep.subr.mxu0 0.0
        %1388 = vmatpush2.msra.mxu0 0.0
        %1389 = vmatprep.subr.mxu0 0.0
        %1390 = vmatpush2.msra.mxu0 0.0
        %1391 = vmatprep.subr.mxu0 0.0
        %1392 = vmatpush2.msra.mxu0 0.0
        %1393 = vmatprep.subr.mxu0 0.0
        %1394 = vmatpush2.msra.mxu0 0.0
        %1395 = vmatprep.subr.mxu0 0.0
        %1396 = vmatpush2.msra.mxu0 0.0
        %1397 = vmatprep.subr.mxu0 0.0
        %1398 = vmatpush2.msra.mxu0 0.0
        %1399 = vmatprep.subr.mxu0 0.0
        %1400 = vmatpush2.msra.mxu0 0.0
        %1401 = vmatprep.subr.mxu0 0.0
        %1402 = vmatpush2.msra.mxu0 0.0
        %1403 = vmatprep.subr.mxu0 0.0
        %1404 = vmatpush2.msra.mxu0 0.0
        %1405 = vmatprep.subr.mxu0 0.0
        %1406 = vmatpush2.msra.mxu0 0.0
        %1407 = vmatprep.subr.mxu0 0.0
        %1408 = vmatpush2.msra.mxu0 0.0
        %1409 = vmatprep.subr.mxu0 0.0
        %1410 = vmatpush2.msra.mxu0 0.0
        %1411 = vmatprep.subr.mxu0 0.0
        %1412 = vmatpush2.msra.mxu0 0.0
        %1413 = vmatprep.mubr.f32.mxu0 0.0
        %1414 = vmatmul.mubr.f32.gmra.mxu0 %v1347
        %v1415 = vpop.f32.mrf.mxu0
        %v1416 = vadd.f32 0.0, %v1415
        %v1417 = vpop.f32.mrf.mxu0
        %1418 = vdwg.mxu0
        %v1420 = vsel %vm638, %v1193, 0
        %1422 = vmatprep.subr.mxu0 0.0
        %1423 = vmatpush1.msra.mxu0 0.0
        %1424 = vmatprep.subr.mxu0 0.0
        %1425 = vmatpush1.msra.mxu0 0.0
        %1426 = vmatprep.subr.mxu0 0.0
        %1427 = vmatpush1.msra.mxu0 0.0
        %1428 = vmatprep.subr.mxu0 0.0
        %1429 = vmatpush1.msra.mxu0 0.0
        %1430 = vmatprep.subr.mxu0 0.0
        %1431 = vmatpush1.msra.mxu0 0.0
        %1432 = vmatprep.subr.mxu0 0.0
        %1433 = vmatpush1.msra.mxu0 0.0
        %1434 = vmatprep.subr.mxu0 0.0
        %1435 = vmatpush1.msra.mxu0 0.0
        %1436 = vmatprep.subr.mxu0 0.0
        %1437 = vmatpush1.msra.mxu0 0.0
        %1438 = vmatprep.subr.mxu0 0.0
        %1439 = vmatpush1.msra.mxu0 0.0
        %1440 = vmatprep.subr.mxu0 0.0
        %1441 = vmatpush1.msra.mxu0 0.0
        %1442 = vmatprep.subr.mxu0 0.0
        %1443 = vmatpush1.msra.mxu0 0.0
        %1444 = vmatprep.subr.mxu0 0.0
        %1445 = vmatpush1.msra.mxu0 0.0
        %1446 = vmatprep.subr.mxu0 0.0
        %1447 = vmatpush1.msra.mxu0 0.0
        %1448 = vmatprep.subr.mxu0 0.0
        %1449 = vmatpush1.msra.mxu0 0.0
        %1450 = vmatprep.subr.mxu0 0.0
        %1451 = vmatpush1.msra.mxu0 0.0
        %1452 = vmatprep.subr.mxu0 0.0
        %1453 = vmatpush1.msra.mxu0 %v1343
        %1454 = vmatprep.subr.mxu0 0.0
        %1455 = vmatpush2.msra.mxu0 0.0
        %1456 = vmatprep.subr.mxu0 0.0
        %1457 = vmatpush2.msra.mxu0 0.0
        %1458 = vmatprep.subr.mxu0 0.0
        %1459 = vmatpush2.msra.mxu0 0.0
        %1460 = vmatprep.subr.mxu0 0.0
        %1461 = vmatpush2.msra.mxu0 0.0
        %1462 = vmatprep.subr.mxu0 0.0
        %1463 = vmatpush2.msra.mxu0 0.0
        %1464 = vmatprep.subr.mxu0 0.0
        %1465 = vmatpush2.msra.mxu0 0.0
        %1466 = vmatprep.subr.mxu0 0.0
        %1467 = vmatpush2.msra.mxu0 0.0
        %1468 = vmatprep.subr.mxu0 0.0
        %1469 = vmatpush2.msra.mxu0 0.0
        %1470 = vmatprep.subr.mxu0 0.0
        %1471 = vmatpush2.msra.mxu0 0.0
        %1472 = vmatprep.subr.mxu0 0.0
        %1473 = vmatpush2.msra.mxu0 0.0
        %1474 = vmatprep.subr.mxu0 0.0
        %1475 = vmatpush2.msra.mxu0 0.0
        %1476 = vmatprep.subr.mxu0 0.0
        %1477 = vmatpush2.msra.mxu0 0.0
        %1478 = vmatprep.subr.mxu0 0.0
        %1479 = vmatpush2.msra.mxu0 0.0
        %1480 = vmatprep.subr.mxu0 0.0
        %1481 = vmatpush2.msra.mxu0 0.0
        %1482 = vmatprep.subr.mxu0 0.0
        %1483 = vmatpush2.msra.mxu0 0.0
        %1484 = vmatprep.subr.mxu0 0.0
        %1485 = vmatpush2.msra.mxu0 0.0
        %1486 = vmatprep.mubr.f32.mxu0 0.0
        %1487 = vmatmul.mubr.f32.gmra.mxu0 %v1420
        %v1488 = vpop.f32.mrf.mxu0
        %v1489 = vadd.f32 0.0, %v1488
        %v1490 = vpop.f32.mrf.mxu0
        %1491 = vdwg.mxu0
        %v1493 = vsel %vm638, %v1266, 0
        %1495 = vmatprep.subr.mxu0 0.0
        %1496 = vmatpush1.msra.mxu0 0.0
        %1497 = vmatprep.subr.mxu0 0.0
        %1498 = vmatpush1.msra.mxu0 0.0
        %1499 = vmatprep.subr.mxu0 0.0
        %1500 = vmatpush1.msra.mxu0 0.0
        %1501 = vmatprep.subr.mxu0 0.0
        %1502 = vmatpush1.msra.mxu0 0.0
        %1503 = vmatprep.subr.mxu0 0.0
        %1504 = vmatpush1.msra.mxu0 0.0
        %1505 = vmatprep.subr.mxu0 0.0
        %1506 = vmatpush1.msra.mxu0 0.0
        %1507 = vmatprep.subr.mxu0 0.0
        %1508 = vmatpush1.msra.mxu0 0.0
        %1509 = vmatprep.subr.mxu0 0.0
        %1510 = vmatpush1.msra.mxu0 0.0
        %1511 = vmatprep.subr.mxu0 0.0
        %1512 = vmatpush1.msra.mxu0 0.0
        %1513 = vmatprep.subr.mxu0 0.0
        %1514 = vmatpush1.msra.mxu0 0.0
        %1515 = vmatprep.subr.mxu0 0.0
        %1516 = vmatpush1.msra.mxu0 0.0
        %1517 = vmatprep.subr.mxu0 0.0
        %1518 = vmatpush1.msra.mxu0 0.0
        %1519 = vmatprep.subr.mxu0 0.0
        %1520 = vmatpush1.msra.mxu0 0.0
        %1521 = vmatprep.subr.mxu0 0.0
        %1522 = vmatpush1.msra.mxu0 0.0
        %1523 = vmatprep.subr.mxu0 0.0
        %1524 = vmatpush1.msra.mxu0 0.0
        %1525 = vmatprep.subr.mxu0 0.0
        %1526 = vmatpush1.msra.mxu0 %v1344
        %1527 = vmatprep.subr.mxu0 0.0
        %1528 = vmatpush2.msra.mxu0 0.0
        %1529 = vmatprep.subr.mxu0 0.0
        %1530 = vmatpush2.msra.mxu0 0.0
        %1531 = vmatprep.subr.mxu0 0.0
        %1532 = vmatpush2.msra.mxu0 0.0
        %1533 = vmatprep.subr.mxu0 0.0
        %1534 = vmatpush2.msra.mxu0 0.0
        %1535 = vmatprep.subr.mxu0 0.0
        %1536 = vmatpush2.msra.mxu0 0.0
        %1537 = vmatprep.subr.mxu0 0.0
        %1538 = vmatpush2.msra.mxu0 0.0
        %1539 = vmatprep.subr.mxu0 0.0
        %1540 = vmatpush2.msra.mxu0 0.0
        %1541 = vmatprep.subr.mxu0 0.0
        %1542 = vmatpush2.msra.mxu0 0.0
        %1543 = vmatprep.subr.mxu0 0.0
        %1544 = vmatpush2.msra.mxu0 0.0
        %1545 = vmatprep.subr.mxu0 0.0
        %1546 = vmatpush2.msra.mxu0 0.0
        %1547 = vmatprep.subr.mxu0 0.0
        %1548 = vmatpush2.msra.mxu0 0.0
        %1549 = vmatprep.subr.mxu0 0.0
        %1550 = vmatpush2.msra.mxu0 0.0
        %1551 = vmatprep.subr.mxu0 0.0
        %1552 = vmatpush2.msra.mxu0 0.0
        %1553 = vmatprep.subr.mxu0 0.0
        %1554 = vmatpush2.msra.mxu0 0.0
        %1555 = vmatprep.subr.mxu0 0.0
        %1556 = vmatpush2.msra.mxu0 0.0
        %1557 = vmatprep.subr.mxu0 0.0
        %1558 = vmatpush2.msra.mxu0 0.0
        %1559 = vmatprep.mubr.f32.mxu0 0.0
        %1560 = vmatmul.mubr.f32.gmra.mxu0 %v1493
        %v1561 = vpop.f32.mrf.mxu0
        %v1562 = vadd.f32 0.0, %v1561
        %v1563 = vpop.f32.mrf.mxu0
        %1564 = vdwg.mxu0
        %v1566 = vsel %vm638, %v1339, 0
        %1568 = vmatprep.subr.mxu0 0.0
        %1569 = vmatpush1.msra.mxu0 0.0
        %1570 = vmatprep.subr.mxu0 0.0
        %1571 = vmatpush1.msra.mxu0 0.0
        %1572 = vmatprep.subr.mxu0 0.0
        %1573 = vmatpush1.msra.mxu0 0.0
        %1574 = vmatprep.subr.mxu0 0.0
        %1575 = vmatpush1.msra.mxu0 0.0
        %1576 = vmatprep.subr.mxu0 0.0
        %1577 = vmatpush1.msra.mxu0 0.0
        %1578 = vmatprep.subr.mxu0 0.0
        %1579 = vmatpush1.msra.mxu0 0.0
        %1580 = vmatprep.subr.mxu0 0.0
        %1581 = vmatpush1.msra.mxu0 0.0
        %1582 = vmatprep.subr.mxu0 0.0
        %1583 = vmatpush1.msra.mxu0 0.0
        %1584 = vmatprep.subr.mxu0 0.0
        %1585 = vmatpush1.msra.mxu0 0.0
        %1586 = vmatprep.subr.mxu0 0.0
        %1587 = vmatpush1.msra.mxu0 0.0
        %1588 = vmatprep.subr.mxu0 0.0
        %1589 = vmatpush1.msra.mxu0 0.0
        %1590 = vmatprep.subr.mxu0 0.0
        %1591 = vmatpush1.msra.mxu0 0.0
        %1592 = vmatprep.subr.mxu0 0.0
        %1593 = vmatpush1.msra.mxu0 0.0
        %1594 = vmatprep.subr.mxu0 0.0
        %1595 = vmatpush1.msra.mxu0 0.0
        %1596 = vmatprep.subr.mxu0 0.0
        %1597 = vmatpush1.msra.mxu0 0.0
        %1598 = vmatprep.subr.mxu0 0.0
        %1599 = vmatpush1.msra.mxu0 %v1345
        %1600 = vmatprep.subr.mxu0 0.0
        %1601 = vmatpush2.msra.mxu0 0.0
        %1602 = vmatprep.subr.mxu0 0.0
        %1603 = vmatpush2.msra.mxu0 0.0
        %1604 = vmatprep.subr.mxu0 0.0
        %1605 = vmatpush2.msra.mxu0 0.0
        %1606 = vmatprep.subr.mxu0 0.0
        %1607 = vmatpush2.msra.mxu0 0.0
        %1608 = vmatprep.subr.mxu0 0.0
        %1609 = vmatpush2.msra.mxu0 0.0
        %1610 = vmatprep.subr.mxu0 0.0
        %1611 = vmatpush2.msra.mxu0 0.0
        %1612 = vmatprep.subr.mxu0 0.0
        %1613 = vmatpush2.msra.mxu0 0.0
        %1614 = vmatprep.subr.mxu0 0.0
        %1615 = vmatpush2.msra.mxu0 0.0
        %1616 = vmatprep.subr.mxu0 0.0
        %1617 = vmatpush2.msra.mxu0 0.0
        %1618 = vmatprep.subr.mxu0 0.0
        %1619 = vmatpush2.msra.mxu0 0.0
        %1620 = vmatprep.subr.mxu0 0.0
        %1621 = vmatpush2.msra.mxu0 0.0
        %1622 = vmatprep.subr.mxu0 0.0
        %1623 = vmatpush2.msra.mxu0 0.0
        %1624 = vmatprep.subr.mxu0 0.0
        %1625 = vmatpush2.msra.mxu0 0.0
        %1626 = vmatprep.subr.mxu0 0.0
        %1627 = vmatpush2.msra.mxu0 0.0
        %1628 = vmatprep.subr.mxu0 0.0
        %1629 = vmatpush2.msra.mxu0 0.0
        %1630 = vmatprep.subr.mxu0 0.0
        %1631 = vmatpush2.msra.mxu0 0.0
        %1632 = vmatprep.mubr.f32.mxu0 0.0
        %1633 = vmatmul.mubr.f32.gmra.mxu0 %v1566
        %v1634 = vpop.f32.mrf.mxu0
        %v1635 = vadd.f32 0.0, %v1634
        %v1636 = vpop.f32.mrf.mxu0
        %1637 = vdwg.mxu0
        %v1638 = vsel %vm412, %v1416, 0.0
        %v1639 = vsel %vm412, %v1489, 0.0
        %v1640 = vadd.f32 %v1638, %v1639
        %v1641 = vsel %vm412, %v1562, 0.0
        %v1642 = vadd.f32 %v1640, %v1641
        %v1643 = vsel %vm412, %v1635, 0.0
        %v1644 = vadd.f32 %v1642, %v1643
        %v1645 = vld [vmem:[%s6] sm:$0x1]
        %v1647 = vlaneseq
        %v1648 = vshrl.u32 %v1647, 7
        %v1649 = vsub.s32 0, %v1648
        %v1650 = vrot.slane %v1645, %v1649
        %v1652 = vadd.f32 %v1644, %v1650
        %1653 = vst.msk [vmem:[%s405] sm:$0xff] %vm412, %v1652
        %s1654 = sand.u32 %s210, 1
        %s1655 = scalar_lea.sflag [#allocation7], %s1654
        %s1656 = sand.u32 %s210, 1
        %s1657 = smul.addr %s1656, 8
        %s1658 = scalar_lea.vmem [#allocation16], %s1657
        // Predicated region
        $region73: #{tpu_custom_call.1} parent=47 // pred_check
          %p1659 = pneg %p220
        $region74: #{tpu_custom_call.1} parent=47 // pred_check_branch
          %1661 = sbr.rel (%p1659) target = $region76
        $region75: #{tpu_custom_call.1} parent=47 // pred_region
          %s1663 = ssub.s32 128, 128
          %1664 = vsyncadd %s1655, %s1663
          %s1665 = sadd.s32 %s34, %s33
          %s1666 = smul.addr %s1665, 128
          %s1667 = scalar_lea.hbm %s7, %s1666
          %s1669 = sshll.u32 %s1658, 4
          %s1670 = int_to_ptr.vmem [resolvable:$true] %s1669
          %1672 = dma.vmem_to_hbm [thread:$0]  %s1670, 128, %s1667, %s1655
        $region76: #{tpu_custom_call.1} parent=47 // pred_fallthru
          _
      $region48: #{tpu_custom_call.1} parent=5 // pred_fallthru
        _
      %p1673 = scmp.le.s32.totalorder 2, %s24
      // Predicated region
      $region77: #{tpu_custom_call.1} parent=5 // pred_check
        %p1674 = pneg %p1673
      $region78: #{tpu_custom_call.1} parent=5 // pred_check_branch
        %1676 = sbr.rel (%p1674) target = $region80
      $region79: #{tpu_custom_call.1} parent=5 // pred_region
        %s1677 = ssub.s32 %s24, 2
        // Predicated region
        $region81: #{tpu_custom_call.1} parent=79 // pred_check
          %p1678 = pneg %p226
        $region82: #{tpu_custom_call.1} parent=79 // pred_check_branch
          %1680 = sbr.rel (%p1678) target = $region84
        $region83: #{tpu_custom_call.1} parent=79 // pred_region
          %s1681 = sand.u32 %s211, 1
          %s1682 = scalar_lea.sflag [#allocation7], %s1681
          %s1683 = sand.u32 %s211, 1
          %s1684 = smul.addr %s1683, 8
          %s1685 = scalar_lea.vmem [#allocation16], %s1684
          %1686 = dma.done %s1682, 128
        $region84: #{tpu_custom_call.1} parent=79 // pred_fallthru
          _
      $region80: #{tpu_custom_call.1} parent=5 // pred_fallthru
        _
    $region6: #{tpu_custom_call.1} parent=1 // loop_footer
      %s28 = sadd.s32 1, %s24
    $region7: #{tpu_custom_call.1} parent=1 // loop_footer_branch
      %23 = sbr.rel target = $region3
    $region8: #{tpu_custom_call.1} parent=1 // loop_exit
      _
    %1687 = vsyncpa [#allocation6], 1
    %s1688 = scalar_lea.sflag [#allocation6], 1
    %1689 = vsyncpa %s1688, 1
    %1690 = vsyncpa [#allocation9], 1
    %s1691 = scalar_lea.sflag [#allocation9], 1
    %1692 = vsyncpa %s1691, 1
    %1693 = vsyncpa [#allocation12], 1
    %1694 = vsyncpa [#allocation15], 1
    %1695 = vsyncpa [#allocation7], 1
    %s1696 = scalar_lea.sflag [#allocation7], 1
    %1697 = vsyncpa %s1696, 1

</llo_original>
